<compile_context>
chip_gen: v5e
topology: v5e:2x2
jax: 0.10.0
libtpu: 0.0.40
codegen_flags: <defaults>
</compile_context>

<pallas_src>
import functools

import jax
import jax.numpy as jnp
from jax.experimental import pallas as pl
from jax.experimental.pallas import tpu as pltpu


def _round_up(x, m):
    return ((x + m - 1) // m) * m


@functools.lru_cache(maxsize=None)
def _vmem_budget_bytes():
    """Chip-aware VMEM budget: physical capacity minus headroom (v7x-safe)."""
    cap = None
    try:
        cap = int(getattr(pltpu.get_tpu_info(), "vmem_capacity_bytes"))
    except Exception:
        cap = None
    if not cap:
        cap = 64 << 20           # conservative fallback: v7x has 64 MiB per TC
    return max(cap - (16 << 20), 24 << 20)


@functools.lru_cache(maxsize=None)
def _buffered_one():
    """pl.Buffered(1) for constant-index (resident) blocks, verified once with
    a tiny pallas_call; returns None if unsupported on this JAX/libtpu."""
    if not hasattr(pl, "Buffered"):
        return None
    try:
        mode = pl.Buffered(1)
        spec = pl.BlockSpec((8, 128), lambda i: (0, 0), pipeline_mode=mode)

        def _probe(c_ref, o_ref):
            o_ref[...] = c_ref[...]

        out = pl.pallas_call(
            _probe,
            out_shape=jax.ShapeDtypeStruct((8, 128), jnp.float32),
            grid=(1,),
            in_specs=[spec],
            out_specs=pl.BlockSpec((8, 128), lambda i: (0, 0)),
        )(jnp.zeros((8, 128), jnp.float32))
        jax.block_until_ready(out)
        return mode
    except Exception:
        return None


def _temporal_block_kernel(x_ref, w1_ref, b1_ref, w2_ref, b2_ref, w3_ref, b3_ref,
                           *rest, k, dilation, padding, pad_off, lt, has_downsample):
    if has_downsample:
        wd_ref, bd_ref, o_ref, xpad, h1pad, h2pad = rest
    else:
        o_ref, xpad, h1pad, h2pad = rest

    p, d = padding, dilation
    l = pl.program_id(1)
    bufs = (xpad, h1pad, h2pad)

    # ---- halo maintenance -------------------------------------------------
    # Zero the (sublane-aligned) pad region ONCE per sequence; between L tiles
    # just carry the last `p` rows of each layer's activations into the halo.
    if pad_off > 0:
        @pl.when(l == 0)
        def _init_halo():
            for buf in bufs:
                buf[pl.ds(0, pad_off), :] = jnp.zeros(
                    (pad_off, buf.shape[1]), buf.dtype)

    if p > 0:
        @pl.when(l > 0)
        def _carry_halo():
            for buf in bufs:
                buf[pl.ds(pad_off - p, p), :] = buf[pl.ds(pad_off + lt - p, p), :]

    # current x tile into the carry buffer (already in compute dtype)
    xpad[pl.ds(pad_off, lt), :] = x_ref[0].astype(xpad.dtype)

    def conv_chomp_relu(buf, w_ref, b_ref):
        # causal dilated conv1d (stride=1) + bias + ReLU (dropout = identity),
        # as k per-tap matmuls accumulated in f32 (no im2col concat staging;
        # MRB-friendly on v7x, lower store pressure on v5e).
        acc = jnp.dot(buf[pl.ds(pad_off - p, lt), :], w_ref[0],
                      preferred_element_type=jnp.float32)
        for t in range(1, k):
            acc = acc + jnp.dot(buf[pl.ds(pad_off - p + t * d, lt), :], w_ref[t],
                                preferred_element_type=jnp.float32)
        return jnp.maximum(acc + b_ref[...], 0.0)

    h1 = conv_chomp_relu(xpad, w1_ref, b1_ref)
    h1pad[pl.ds(pad_off, lt), :] = h1.astype(h1pad.dtype)
    h2 = conv_chomp_relu(h1pad, w2_ref, b2_ref)
    h2pad[pl.ds(pad_off, lt), :] = h2.astype(h2pad.dtype)
    h3 = conv_chomp_relu(h2pad, w3_ref, b3_ref)

    # residual path
    if has_downsample:
        res = jnp.dot(x_ref[0].astype(wd_ref.dtype), wd_ref[...],
                      preferred_element_type=jnp.float32) + bd_ref[...]
    else:
        res = x_ref[0].astype(jnp.float32)        # downsample is None -> identity

    o_ref[0] = jnp.maximum(h3 + res, 0.0).astype(o_ref.dtype)


def _weight_norm(v, g):
    # PyTorch weight_norm(dim=0) on Conv1d weight (C_out, C_in, k):
    # per-output-channel L2 norm over (C_in, k).
    nrm = jnp.sqrt(jnp.sum(v * v, axis=(1, 2), keepdims=True))
    return v * (g.reshape(-1, 1, 1) / nrm)


def prepare_params(params, *, compute_dtype=jnp.bfloat16):
    """Weight-norm, channel-pad to lane multiples, lay weights out per-tap.
    Call once and reuse (also across stacked blocks)."""
    w1 = _weight_norm(params["v1"], params["g1"])            # (C_out, C_in, k)
    w2 = _weight_norm(params["v2"], params["g2"])
    w3 = _weight_norm(params["v3"], params["g3"])
    C_out, C_in, k = w1.shape
    has_downsample = "wd" in params
    if not has_downsample:
        assert C_in == C_out, "downsample=None requires n_inputs == n_outputs"

    C_in_p = _round_up(max(C_in, 1), 128)
    C_out_p = _round_up(max(C_out, 1), 128)

    def prep_w(w, cin_p, cout_p):
        # (C_out, C_in, k) -> per-tap, channel-padded (k, C_in_p, C_out_p)
        co, ci, kk = w.shape
        wp = jnp.zeros((kk, cin_p, cout_p), jnp.float32)
        wp = wp.at[:, :ci, :co].set(jnp.transpose(w, (2, 1, 0)))
        return wp.astype(compute_dtype)

    def prep_b(b, cout_p):
        return jnp.zeros((1, cout_p), jnp.float32).at[0, :b.shape[0]].set(b)

    prepared = dict(
        k=k, C_in=C_in, C_out=C_out, C_in_p=C_in_p, C_out_p=C_out_p,
        has_downsample=has_downsample, compute_dtype=compute_dtype,
        w1=prep_w(w1, C_in_p, C_out_p), b1=prep_b(params["b1"], C_out_p),
        w2=prep_w(w2, C_out_p, C_out_p), b2=prep_b(params["b2"], C_out_p),
        w3=prep_w(w3, C_out_p, C_out_p), b3=prep_b(params["b3"], C_out_p),
    )
    if has_downsample:
        wd = params["wd"][:, :, 0].T                          # (C_in, C_out)
        wdp = jnp.zeros((C_in_p, C_out_p), jnp.float32).at[:C_in, :C_out].set(wd)
        prepared["wd"] = wdp.astype(compute_dtype)
        prepared["bd"] = prep_b(params["bd"], C_out_p)
    return prepared


def temporal_block_nlc(x_nlc, prepared, *, dilation, padding, l_tile=None):
    """Channels-last, channel-padded entry point for stacked TemporalBlocks.

    x_nlc: (N, L, C_in_p) in prepared['compute_dtype'].  Returns
    (N, L, C_out_p) in the same dtype — keep activations in this layout
    between blocks to avoid per-block transpose/pad/slice HBM round-trips.
    """
    k, p, d = prepared["k"], padding, dilation
    assert p == (k - 1) * d, "TemporalBlock requires padding == (k-1)*dilation"
    N, L, C_in_p = x_nlc.shape
    assert C_in_p == prepared["C_in_p"], "x must be channel-padded to C_in_p"
    C_out_p = prepared["C_out_p"]
    cdt = prepared["compute_dtype"]
    has_downsample = prepared["has_downsample"]
    x_nlc = x_nlc.astype(cdt)

    cd = jnp.dtype(cdt).itemsize
    pad_off = _round_up(p, 8) if p > 0 else 0                 # sublane-aligned pad
    budget = _vmem_budget_bytes()
    buffered_one = _buffered_one()
    w_mult = 1 if buffered_one is not None else 2             # single vs double buf

    w_elems = k * C_in_p * C_out_p + 2 * k * C_out_p * C_out_p
    if has_downsample:
        w_elems += C_in_p * C_out_p
    b_bytes = w_mult * (4 if has_downsample else 3) * C_out_p * 4

    def vmem_est(lt):
        io = 2 * lt * (C_in_p + C_out_p) * cd                 # double-buffered x/out
        scratch = (pad_off + lt) * (C_in_p + 2 * C_out_p) * cd
        return w_mult * w_elems * cd + b_bytes + io + scratch + (2 << 20)

    # ---- L-tile selection ---------------------------------------------------
    if l_tile is None:
        target = 1024        # >=512 rows reaches ~85% of HBM roofline; cap for VMEM
        cands = sorted({L} | {m for m in range(8, L, 8) if L % m == 0})
        cands = [c for c in cands if c >= max(p, 1)]
        assert cands, "no valid l_tile (need a tile >= padding that divides L)"
        fitting = [c for c in cands if vmem_est(c) <= budget]
        small = [c for c in fitting if c <= target]
        lt = max(small) if small else (min(fitting) if fitting else min(cands))
    else:
        lt = l_tile
        assert L % lt == 0, "l_tile must divide L"
        assert lt == L or lt % 8 == 0, "l_tile must be a multiple of 8"
        assert lt >= max(p, 1), "l_tile must be >= padding (causal halo carry)"
    n_lt = L // lt

    est = vmem_est(lt) + (2 << 20)
    vmem_limit = int(min(max(32 << 20, est), budget)) if est <= budget else int(est)

    kern = functools.partial(
        _temporal_block_kernel, k=k, dilation=d, padding=p,
        pad_off=pad_off, lt=lt, has_downsample=has_downsample)

    def const_spec(shape):
        # Resident (constant-index) block; single-buffer it when supported.
        idx = lambda n, l, _s=shape: (0,) * len(_s)
        if buffered_one is not None:
            return pl.BlockSpec(shape, idx, pipeline_mode=buffered_one)
        return pl.BlockSpec(shape, idx)

    in_specs = [
        pl.BlockSpec((1, lt, C_in_p), lambda n, l: (n, l, 0)),
        const_spec((k, C_in_p, C_out_p)), const_spec((1, C_out_p)),
        const_spec((k, C_out_p, C_out_p)), const_spec((1, C_out_p)),
        const_spec((k, C_out_p, C_out_p)), const_spec((1, C_out_p)),
    ]
    args = [x_nlc, prepared["w1"], prepared["b1"], prepared["w2"], prepared["b2"],
            prepared["w3"], prepared["b3"]]
    if has_downsample:
        in_specs += [const_spec((C_in_p, C_out_p)), const_spec((1, C_out_p))]
        args += [prepared["wd"], prepared["bd"]]

    return pl.pallas_call(
        kern,
        out_shape=jax.ShapeDtypeStruct((N, L, C_out_p), cdt),
        grid_spec=pltpu.PrefetchScalarGridSpec(
            num_scalar_prefetch=0,
            grid=(N, n_lt),
            in_specs=in_specs,
            out_specs=pl.BlockSpec((1, lt, C_out_p), lambda n, l: (n, l, 0)),
            scratch_shapes=[
                pltpu.VMEM((pad_off + lt, C_in_p), cdt),    # x carry
                pltpu.VMEM((pad_off + lt, C_out_p), cdt),   # h1 carry
                pltpu.VMEM((pad_off + lt, C_out_p), cdt),   # h2 carry
            ],
        ),
        compiler_params=pltpu.CompilerParams(
            dimension_semantics=("parallel", "arbitrary"),
            vmem_limit_bytes=vmem_limit,
        ),
    )(*args)


def temporal_block(x_ncl, params, *, kernel_size, dilation, padding,
                   l_tile=None, compute_dtype=jnp.bfloat16):
    """PyTorch-layout compat wrapper: x_ncl (N, C_in, L) float32 ->
    (N, C_out, L) in compute_dtype.  For stacked blocks, call prepare_params
    once and use temporal_block_nlc directly (channel-padded NLC in/out)."""
    N, C_in, L = x_ncl.shape
    assert padding == (kernel_size - 1) * dilation, \
        "TemporalBlock requires padding == (k-1)*dilation"
    prepared = prepare_params(params, compute_dtype=compute_dtype)
    assert prepared["k"] == kernel_size and prepared["C_in"] == C_in
    C_in_p, C_out = prepared["C_in_p"], prepared["C_out"]

    # NCL -> channel-padded NLC in the I/O/compute dtype (single fused XLA op).
    x_nlc = jnp.transpose(x_ncl, (0, 2, 1))
    if C_in_p != C_in:
        x_nlc = jnp.pad(x_nlc, ((0, 0), (0, 0), (0, C_in_p - C_in)))
    x_nlc = x_nlc.astype(compute_dtype)

    out_nlc = temporal_block_nlc(x_nlc, prepared, dilation=dilation,
                                 padding=padding, l_tile=l_tile)
    return jnp.transpose(out_nlc[:, :, :C_out], (0, 2, 1))    # (N, C_out, L)


def _reference(x, params, *, kernel_size, dilation, padding):
    """Pure-JAX f32 reference reproducing the PyTorch forward (eval mode)."""
    def conv_chomp_relu(h, w, b):
        y = jax.lax.conv_general_dilated(
            h, w, window_strides=(1,), padding=[(padding, padding)],
            rhs_dilation=(dilation,), dimension_numbers=("NCH", "OIH", "NCH"))
        y = y + b[None, :, None]
        y = y[:, :, :h.shape[2]]                               # Chomp1d
        return jnp.maximum(y, 0.0)

    h = conv_chomp_relu(x, _weight_norm(params["v1"], params["g1"]), params["b1"])
    h = conv_chomp_relu(h, _weight_norm(params["v2"], params["g2"]), params["b2"])
    h = conv_chomp_relu(h, _weight_norm(params["v3"], params["g3"]), params["b3"])
    if "wd" in params:
        res = jax.lax.conv_general_dilated(
            x, params["wd"], window_strides=(1,), padding=[(0, 0)],
            dimension_numbers=("NCH", "OIH", "NCH")) + params["bd"][None, :, None]
    else:
        res = x
    return jnp.maximum(h + res, 0.0)


if __name__ == "__main__":
    keys = jax.random.split(jax.random.PRNGKey(0), 24)

    # ---- case 1: C_in != C_out (1x1 downsample conv present) ---------------
    N, C_in, C_out, L = 2, 4, 8, 16
    k, dilation = 3, 2
    padding = (k - 1) * dilation
    params = {
        "v1": 0.01 * jax.random.normal(keys[0], (C_out, C_in, k), jnp.float32),
        "g1": 1.0 + 0.1 * jax.random.normal(keys[1], (C_out,), jnp.float32),
        "b1": 0.05 * jax.random.normal(keys[2], (C_out,), jnp.float32),
        "v2": 0.01 * jax.random.normal(keys[3], (C_out, C_out, k), jnp.float32),
        "g2": 1.0 + 0.1 * jax.random.normal(keys[4], (C_out,), jnp.float32),
        "b2": 0.05 * jax.random.normal(keys[5], (C_out,), jnp.float32),
        "v3": 0.01 * jax.random.normal(keys[6], (C_out, C_out, k), jnp.float32),
        "g3": 1.0 + 0.1 * jax.random.normal(keys[7], (C_out,), jnp.float32),
        "b3": 0.05 * jax.random.normal(keys[8], (C_out,), jnp.float32),
        "wd": 0.01 * jax.random.normal(keys[9], (C_out, C_in, 1), jnp.float32),
        "bd": 0.05 * jax.random.normal(keys[10], (C_out,), jnp.float32),
    }
    x = jax.random.normal(keys[11], (N, C_in, L), jnp.float32)
    ref = _reference(x, params, kernel_size=k, dilation=dilation, padding=padding)

    # f32 compute/IO path: exact check (exercises L tiling / halo carry, lt=8 < L).
    out_f32 = temporal_block(x, params, kernel_size=k, dilation=dilation,
                             padding=padding, l_tile=8, compute_dtype=jnp.float32)
    out_f32 = jax.block_until_ready(out_f32)
    assert out_f32.shape == (N, C_out, L), out_f32.shape
    assert jnp.allclose(out_f32, ref, rtol=1e-5, atol=1e-5), \
        float(jnp.max(jnp.abs(out_f32 - ref)))

    # bf16 MXU + bf16 HBM I/O path (f32 accumulation), auto l_tile selection:
    # looser tolerance vs the f32 reference.
    out_bf16 = temporal_block(x, params, kernel_size=k, dilation=dilation,
                              padding=padding)
    out_bf16 = jax.block_until_ready(out_bf16)
    assert out_bf16.shape == (N, C_out, L), out_bf16.shape
    assert out_bf16.dtype == jnp.bfloat16, out_bf16.dtype
    assert jnp.allclose(out_bf16.astype(jnp.float32), ref, rtol=1e-1, atol=1e-1), \
        float(jnp.max(jnp.abs(out_bf16.astype(jnp.float32) - ref)))

    # ---- case 2: C_in == C_out (downsample is None -> identity residual) ---
    C = 8
    k2, d2 = 3, 1
    pad2 = (k2 - 1) * d2
    params2 = {
        "v1": 0.01 * jax.random.normal(keys[12], (C, C, k2), jnp.float32),
        "g1": 1.0 + 0.1 * jax.random.normal(keys[13], (C,), jnp.float32),
        "b1": 0.05 * jax.random.normal(keys[14], (C,), jnp.float32),
        "v2": 0.01 * jax.random.normal(keys[15], (C, C, k2), jnp.float32),
        "g2": 1.0 + 0.1 * jax.random.normal(keys[16], (C,), jnp.float32),
        "b2": 0.05 * jax.random.normal(keys[17], (C,), jnp.float32),
        "v3": 0.01 * jax.random.normal(keys[18], (C, C, k2), jnp.float32),
        "g3": 1.0 + 0.1 * jax.random.normal(keys[19], (C,), jnp.float32),
        "b3": 0.05 * jax.random.normal(keys[20], (C,), jnp.float32),
    }
    x2 = jax.random.normal(keys[21], (N, C, L), jnp.float32)
    ref2 = _reference(x2, params2, kernel_size=k2, dilation=d2, padding=pad2)
    out2 = temporal_block(x2, params2, kernel_size=k2, dilation=d2, padding=pad2,
                          compute_dtype=jnp.float32)          # auto l_tile
    out2 = jax.block_until_ready(out2)
    assert out2.shape == (N, C, L), out2.shape
    assert jnp.allclose(out2, ref2, rtol=1e-5, atol=1e-5), \
        float(jnp.max(jnp.abs(out2 - ref2)))

    print("KERNEL_OK")
</pallas_src>

<mosaic_0001>
module attributes {stable_mosaic.version = 11 : i64} {
  func.func @_probe(%arg0: i32, %arg1: memref<8x128xf32, #tpu.memory_space<vmem>>, %arg2: memref<8x128xf32, #tpu.memory_space<vmem>>) attributes {dimension_semantics = [#tpu.dimension_semantics<arbitrary>], iteration_bounds = array<i64: 1>, scalar_prefetch = 0 : i64, scratch_operands = 0 : i64, tpu.core_type = #tpu.core_type<tc>, window_params = [{pipeline_mode = #tpu.pipeline_mode<synchronous>, transform_indices = @transform_0, window_bounds = array<i64: 8, 128>}, {pipeline_mode = #tpu.pipeline_mode<synchronous>, transform_indices = @transform_1, window_bounds = array<i64: 8, 128>}]} {
    %c0 = arith.constant 0 : index
    %c0_0 = arith.constant 0 : index
    %0 = vector.load %arg1[%c0, %c0_0] : memref<8x128xf32, #tpu.memory_space<vmem>>, vector<8x128xf32>
    %c0_1 = arith.constant 0 : index
    %c0_2 = arith.constant 0 : index
    %1 = vector.load %arg2[%c0_1, %c0_2] : memref<8x128xf32, #tpu.memory_space<vmem>>, vector<8x128xf32>
    tpu.vector_store %arg2[%c0_1, %c0_2], %0 {strides = array<i32>} : memref<8x128xf32, #tpu.memory_space<vmem>>, vector<8x128xf32>,
    return
  }
  func.func @transform_0(%arg0: i32) -> (i32, i32) {
    %c0_i32 = arith.constant 0 : i32
    %c0_i32_0 = arith.constant 0 : i32
    %c0_i32_1 = arith.constant 0 : i32
    return %c0_i32, %c0_i32_0 : i32, i32
  }
  func.func @transform_1(%arg0: i32) -> (i32, i32) {
    %c0_i32 = arith.constant 0 : i32
    %c0_i32_0 = arith.constant 0 : i32
    %c0_i32_1 = arith.constant 0 : i32
    return %c0_i32, %c0_i32_0 : i32, i32
  }
}

module attributes {stable_mosaic.version = 11 : i64} {
  func.func @_temporal_block_kernel(%arg0: i32, %arg1: i32, %arg2: memref<1x8x128xf32, #tpu.memory_space<vmem>>, %arg3: memref<3x128x128xf32, #tpu.memory_space<vmem>>, %arg4: memref<1x128xf32, #tpu.memory_space<vmem>>, %arg5: memref<3x128x128xf32, #tpu.memory_space<vmem>>, %arg6: memref<1x128xf32, #tpu.memory_space<vmem>>, %arg7: memref<3x128x128xf32, #tpu.memory_space<vmem>>, %arg8: memref<1x128xf32, #tpu.memory_space<vmem>>, %arg9: memref<128x128xf32, #tpu.memory_space<vmem>>, %arg10: memref<1x128xf32, #tpu.memory_space<vmem>>, %arg11: memref<1x8x128xf32, #tpu.memory_space<vmem>>, %arg12: memref<16x128xf32, #tpu.memory_space<vmem>>, %arg13: memref<16x128xf32, #tpu.memory_space<vmem>>, %arg14: memref<16x128xf32, #tpu.memory_space<vmem>>) attributes {dimension_semantics = [#tpu.dimension_semantics<parallel>, #tpu.dimension_semantics<arbitrary>], iteration_bounds = array<i64: 2, 2>, scalar_prefetch = 0 : i64, scratch_operands = 3 : i64, tpu.core_type = #tpu.core_type<tc>, window_params = [{transform_indices = @transform_0, window_bounds = array<i64: 1, 8, 128>}, {pipeline_mode = #tpu.pipeline_mode<synchronous>, transform_indices = @transform_1, window_bounds = array<i64: 3, 128, 128>}, {pipeline_mode = #tpu.pipeline_mode<synchronous>, transform_indices = @transform_2, window_bounds = array<i64: 1, 128>}, {pipeline_mode = #tpu.pipeline_mode<synchronous>, transform_indices = @transform_3, window_bounds = array<i64: 3, 128, 128>}, {pipeline_mode = #tpu.pipeline_mode<synchronous>, transform_indices = @transform_4, window_bounds = array<i64: 1, 128>}, {pipeline_mode = #tpu.pipeline_mode<synchronous>, transform_indices = @transform_5, window_bounds = array<i64: 3, 128, 128>}, {pipeline_mode = #tpu.pipeline_mode<synchronous>, transform_indices = @transform_6, window_bounds = array<i64: 1, 128>}, {pipeline_mode = #tpu.pipeline_mode<synchronous>, transform_indices = @transform_7, window_bounds = array<i64: 128, 128>}, {pipeline_mode = #tpu.pipeline_mode<synchronous>, transform_indices = @transform_8, window_bounds = array<i64: 1, 128>}, {transform_indices = @transform_9, window_bounds = array<i64: 1, 8, 128>}]} {
    %c0_i32 = arith.constant 0 : i32
    %0 = arith.cmpi eq, %arg1, %c0_i32 : i32
    %1 = arith.extui %0 : i1 to i32
    %c0_i32_0 = arith.constant 0 : i32
    %2 = arith.cmpi ne, %1, %c0_i32_0 : i32
    scf.if %2 {
      %cst_80 = arith.constant 0.000000e+00 : f32
      %81 = vector.broadcast %cst_80 : f32 to vector<8x128xf32>
      %c0_81 = arith.constant 0 : index
      %c0_82 = arith.constant 0 : index
      %82 = vector.load %arg12[%c0_81, %c0_82] : memref<16x128xf32, #tpu.memory_space<vmem>>, vector<8x128xf32>
      tpu.vector_store %arg12[%c0_81, %c0_82], %81 {strides = array<i32>} : memref<16x128xf32, #tpu.memory_space<vmem>>, vector<8x128xf32>,
      %cst_83 = arith.constant 0.000000e+00 : f32
      %83 = vector.broadcast %cst_83 : f32 to vector<8x128xf32>
      %c0_84 = arith.constant 0 : index
      %c0_85 = arith.constant 0 : index
      %84 = vector.load %arg13[%c0_84, %c0_85] : memref<16x128xf32, #tpu.memory_space<vmem>>, vector<8x128xf32>
      tpu.vector_store %arg13[%c0_84, %c0_85], %83 {strides = array<i32>} : memref<16x128xf32, #tpu.memory_space<vmem>>, vector<8x128xf32>,
      %cst_86 = arith.constant 0.000000e+00 : f32
      %85 = vector.broadcast %cst_86 : f32 to vector<8x128xf32>
      %c0_87 = arith.constant 0 : index
      %c0_88 = arith.constant 0 : index
      %86 = vector.load %arg14[%c0_87, %c0_88] : memref<16x128xf32, #tpu.memory_space<vmem>>, vector<8x128xf32>
      tpu.vector_store %arg14[%c0_87, %c0_88], %85 {strides = array<i32>} : memref<16x128xf32, #tpu.memory_space<vmem>>, vector<8x128xf32>,
    } else {
    }
    %c0_i32_1 = arith.constant 0 : i32
    %3 = arith.cmpi sgt, %arg1, %c0_i32_1 : i32
    %4 = arith.extui %3 : i1 to i32
    %c0_i32_2 = arith.constant 0 : i32
    %5 = arith.cmpi ne, %4, %c0_i32_2 : i32
    scf.if %5 {
      %c12 = arith.constant 12 : index
      %c0_80 = arith.constant 0 : index
      %81 = vector.load %arg12[%c12, %c0_80] : memref<16x128xf32, #tpu.memory_space<vmem>>, vector<4x128xf32>
      %c4_81 = arith.constant 4 : index
      %c0_82 = arith.constant 0 : index
      %82 = vector.load %arg12[%c4_81, %c0_82] : memref<16x128xf32, #tpu.memory_space<vmem>>, vector<4x128xf32>
      tpu.vector_store %arg12[%c4_81, %c0_82], %81 {strides = array<i32>} : memref<16x128xf32, #tpu.memory_space<vmem>>, vector<4x128xf32>,
      %c12_83 = arith.constant 12 : index
      %c0_84 = arith.constant 0 : index
      %83 = vector.load %arg13[%c12_83, %c0_84] : memref<16x128xf32, #tpu.memory_space<vmem>>, vector<4x128xf32>
      %c4_85 = arith.constant 4 : index
      %c0_86 = arith.constant 0 : index
      %84 = vector.load %arg13[%c4_85, %c0_86] : memref<16x128xf32, #tpu.memory_space<vmem>>, vector<4x128xf32>
      tpu.vector_store %arg13[%c4_85, %c0_86], %83 {strides = array<i32>} : memref<16x128xf32, #tpu.memory_space<vmem>>, vector<4x128xf32>,
      %c12_87 = arith.constant 12 : index
      %c0_88 = arith.constant 0 : index
      %85 = vector.load %arg14[%c12_87, %c0_88] : memref<16x128xf32, #tpu.memory_space<vmem>>, vector<4x128xf32>
      %c4_89 = arith.constant 4 : index
      %c0_90 = arith.constant 0 : index
      %86 = vector.load %arg14[%c4_89, %c0_90] : memref<16x128xf32, #tpu.memory_space<vmem>>, vector<4x128xf32>
      tpu.vector_store %arg14[%c4_89, %c0_90], %85 {strides = array<i32>} : memref<16x128xf32, #tpu.memory_space<vmem>>, vector<4x128xf32>,
    } else {
    }
    %c0 = arith.constant 0 : index
    %c0_3 = arith.constant 0 : index
    %c0_4 = arith.constant 0 : index
    %6 = vector.load %arg2[%c0, %c0_3, %c0_4] : memref<1x8x128xf32, #tpu.memory_space<vmem>>, vector<1x8x128xf32>
    %7 = vector.shape_cast %6 : vector<1x8x128xf32> to vector<8x128xf32>
    %c8 = arith.constant 8 : index
    %c0_5 = arith.constant 0 : index
    %8 = vector.load %arg12[%c8, %c0_5] : memref<16x128xf32, #tpu.memory_space<vmem>>, vector<8x128xf32>
    tpu.vector_store %arg12[%c8, %c0_5], %7 {strides = array<i32>} : memref<16x128xf32, #tpu.memory_space<vmem>>, vector<8x128xf32>,
    %c4 = arith.constant 4 : index
    %c0_6 = arith.constant 0 : index
    %9 = vector.load %arg12[%c4, %c0_6] : memref<16x128xf32, #tpu.memory_space<vmem>>, vector<8x128xf32>
    %c0_7 = arith.constant 0 : index
    %c0_8 = arith.constant 0 : index
    %c0_9 = arith.constant 0 : index
    %10 = vector.load %arg3[%c0_7, %c0_8, %c0_9] : memref<3x128x128xf32, #tpu.memory_space<vmem>>, vector<1x128x128xf32>
    %11 = vector.shape_cast %10 : vector<1x128x128xf32> to vector<128x128xf32>
    %cst = arith.constant dense<0.000000e+00> : vector<8x128xf32>
    %12 = tpu.matmul %9, %11, %cst {dimension_numbers = #tpu.dot_dimension_numbers<[1], [0], [0], [1], [0, 0, 1, 1], [], []>} : vector<8x128xf32>, vector<128x128xf32>, vector<8x128xf32> -> vector<8x128xf32>
    %c6 = arith.constant 6 : index
    %c0_10 = arith.constant 0 : index
    %13 = vector.load %arg12[%c6, %c0_10] : memref<16x128xf32, #tpu.memory_space<vmem>>, vector<8x128xf32>
    %c1 = arith.constant 1 : index
    %c0_11 = arith.constant 0 : index
    %c0_12 = arith.constant 0 : index
    %14 = vector.load %arg3[%c1, %c0_11, %c0_12] : memref<3x128x128xf32, #tpu.memory_space<vmem>>, vector<1x128x128xf32>
    %15 = vector.shape_cast %14 : vector<1x128x128xf32> to vector<128x128xf32>
    %cst_13 = arith.constant dense<0.000000e+00> : vector<8x128xf32>
    %16 = tpu.matmul %13, %15, %cst_13 {dimension_numbers = #tpu.dot_dimension_numbers<[1], [0], [0], [1], [0, 0, 1, 1], [], []>} : vector<8x128xf32>, vector<128x128xf32>, vector<8x128xf32> -> vector<8x128xf32>
    %17 = arith.addf %12, %16 : vector<8x128xf32>
    %c8_14 = arith.constant 8 : index
    %c0_15 = arith.constant 0 : index
    %18 = vector.load %arg12[%c8_14, %c0_15] : memref<16x128xf32, #tpu.memory_space<vmem>>, vector<8x128xf32>
    %c2 = arith.constant 2 : index
    %c0_16 = arith.constant 0 : index
    %c0_17 = arith.constant 0 : index
    %19 = vector.load %arg3[%c2, %c0_16, %c0_17] : memref<3x128x128xf32, #tpu.memory_space<vmem>>, vector<1x128x128xf32>
    %20 = vector.shape_cast %19 : vector<1x128x128xf32> to vector<128x128xf32>
    %cst_18 = arith.constant dense<0.000000e+00> : vector<8x128xf32>
    %21 = tpu.matmul %18, %20, %cst_18 {dimension_numbers = #tpu.dot_dimension_numbers<[1], [0], [0], [1], [0, 0, 1, 1], [], []>} : vector<8x128xf32>, vector<128x128xf32>, vector<8x128xf32> -> vector<8x128xf32>
    %22 = arith.addf %17, %21 : vector<8x128xf32>
    %c0_19 = arith.constant 0 : index
    %c0_20 = arith.constant 0 : index
    %23 = vector.load %arg4[%c0_19, %c0_20] : memref<1x128xf32, #tpu.memory_space<vmem>>, vector<1x128xf32>
    %24 = vector.broadcast %23 : vector<1x128xf32> to vector<8x128xf32>
    %25 = arith.addf %22, %24 : vector<8x128xf32>
    %cst_21 = arith.constant 0.000000e+00 : f32
    %26 = vector.broadcast %cst_21 : f32 to vector<8x128xf32>
    %27 = arith.maximumf %25, %26 : vector<8x128xf32>
    %c8_22 = arith.constant 8 : index
    %c0_23 = arith.constant 0 : index
    %28 = vector.load %arg13[%c8_22, %c0_23] : memref<16x128xf32, #tpu.memory_space<vmem>>, vector<8x128xf32>
    tpu.vector_store %arg13[%c8_22, %c0_23], %27 {strides = array<i32>} : memref<16x128xf32, #tpu.memory_space<vmem>>, vector<8x128xf32>,
    %c4_24 = arith.constant 4 : index
    %c0_25 = arith.constant 0 : index
    %29 = vector.load %arg13[%c4_24, %c0_25] : memref<16x128xf32, #tpu.memory_space<vmem>>, vector<8x128xf32>
    %c0_26 = arith.constant 0 : index
    %c0_27 = arith.constant 0 : index
    %c0_28 = arith.constant 0 : index
    %30 = vector.load %arg5[%c0_26, %c0_27, %c0_28] : memref<3x128x128xf32, #tpu.memory_space<vmem>>, vector<1x128x128xf32>
    %31 = vector.shape_cast %30 : vector<1x128x128xf32> to vector<128x128xf32>
    %cst_29 = arith.constant dense<0.000000e+00> : vector<8x128xf32>
    %32 = tpu.matmul %29, %31, %cst_29 {dimension_numbers = #tpu.dot_dimension_numbers<[1], [0], [0], [1], [0, 0, 1, 1], [], []>} : vector<8x128xf32>, vector<128x128xf32>, vector<8x128xf32> -> vector<8x128xf32>
    %c6_30 = arith.constant 6 : index
    %c0_31 = arith.constant 0 : index
    %33 = vector.load %arg13[%c6_30, %c0_31] : memref<16x128xf32, #tpu.memory_space<vmem>>, vector<8x128xf32>
    %c1_32 = arith.constant 1 : index
    %c0_33 = arith.constant 0 : index
    %c0_34 = arith.constant 0 : index
    %34 = vector.load %arg5[%c1_32, %c0_33, %c0_34] : memref<3x128x128xf32, #tpu.memory_space<vmem>>, vector<1x128x128xf32>
    %35 = vector.shape_cast %34 : vector<1x128x128xf32> to vector<128x128xf32>
    %cst_35 = arith.constant dense<0.000000e+00> : vector<8x128xf32>
    %36 = tpu.matmul %33, %35, %cst_35 {dimension_numbers = #tpu.dot_dimension_numbers<[1], [0], [0], [1], [0, 0, 1, 1], [], []>} : vector<8x128xf32>, vector<128x128xf32>, vector<8x128xf32> -> vector<8x128xf32>
    %37 = arith.addf %32, %36 : vector<8x128xf32>
    %c8_36 = arith.constant 8 : index
    %c0_37 = arith.constant 0 : index
    %38 = vector.load %arg13[%c8_36, %c0_37] : memref<16x128xf32, #tpu.memory_space<vmem>>, vector<8x128xf32>
    %c2_38 = arith.constant 2 : index
    %c0_39 = arith.constant 0 : index
    %c0_40 = arith.constant 0 : index
    %39 = vector.load %arg5[%c2_38, %c0_39, %c0_40] : memref<3x128x128xf32, #tpu.memory_space<vmem>>, vector<1x128x128xf32>
    %40 = vector.shape_cast %39 : vector<1x128x128xf32> to vector<128x128xf32>
    %cst_41 = arith.constant dense<0.000000e+00> : vector<8x128xf32>
    %41 = tpu.matmul %38, %40, %cst_41 {dimension_numbers = #tpu.dot_dimension_numbers<[1], [0], [0], [1], [0, 0, 1, 1], [], []>} : vector<8x128xf32>, vector<128x128xf32>, vector<8x128xf32> -> vector<8x128xf32>
    %42 = arith.addf %37, %41 : vector<8x128xf32>
    %c0_42 = arith.constant 0 : index
    %c0_43 = arith.constant 0 : index
    %43 = vector.load %arg6[%c0_42, %c0_43] : memref<1x128xf32, #tpu.memory_space<vmem>>, vector<1x128xf32>
    %44 = vector.broadcast %43 : vector<1x128xf32> to vector<8x128xf32>
    %45 = arith.addf %42, %44 : vector<8x128xf32>
    %cst_44 = arith.constant 0.000000e+00 : f32
    %46 = vector.broadcast %cst_44 : f32 to vector<8x128xf32>
    %47 = arith.maximumf %45, %46 : vector<8x128xf32>
    %c8_45 = arith.constant 8 : index
    %c0_46 = arith.constant 0 : index
    %48 = vector.load %arg14[%c8_45, %c0_46] : memref<16x128xf32, #tpu.memory_space<vmem>>, vector<8x128xf32>
    tpu.vector_store %arg14[%c8_45, %c0_46], %47 {strides = array<i32>} : memref<16x128xf32, #tpu.memory_space<vmem>>, vector<8x128xf32>,
    %c4_47 = arith.constant 4 : index
    %c0_48 = arith.constant 0 : index
    %49 = vector.load %arg14[%c4_47, %c0_48] : memref<16x128xf32, #tpu.memory_space<vmem>>, vector<8x128xf32>
    %c0_49 = arith.constant 0 : index
    %c0_50 = arith.constant 0 : index
    %c0_51 = arith.constant 0 : index
    %50 = vector.load %arg7[%c0_49, %c0_50, %c0_51] : memref<3x128x128xf32, #tpu.memory_space<vmem>>, vector<1x128x128xf32>
    %51 = vector.shape_cast %50 : vector<1x128x128xf32> to vector<128x128xf32>
    %cst_52 = arith.constant dense<0.000000e+00> : vector<8x128xf32>
    %52 = tpu.matmul %49, %51, %cst_52 {dimension_numbers = #tpu.dot_dimension_numbers<[1], [0], [0], [1], [0, 0, 1, 1], [], []>} : vector<8x128xf32>, vector<128x128xf32>, vector<8x128xf32> -> vector<8x128xf32>
    %c6_53 = arith.constant 6 : index
    %c0_54 = arith.constant 0 : index
    %53 = vector.load %arg14[%c6_53, %c0_54] : memref<16x128xf32, #tpu.memory_space<vmem>>, vector<8x128xf32>
    %c1_55 = arith.constant 1 : index
    %c0_56 = arith.constant 0 : index
    %c0_57 = arith.constant 0 : index
    %54 = vector.load %arg7[%c1_55, %c0_56, %c0_57] : memref<3x128x128xf32, #tpu.memory_space<vmem>>, vector<1x128x128xf32>
    %55 = vector.shape_cast %54 : vector<1x128x128xf32> to vector<128x128xf32>
    %cst_58 = arith.constant dense<0.000000e+00> : vector<8x128xf32>
    %56 = tpu.matmul %53, %55, %cst_58 {dimension_numbers = #tpu.dot_dimension_numbers<[1], [0], [0], [1], [0, 0, 1, 1], [], []>} : vector<8x128xf32>, vector<128x128xf32>, vector<8x128xf32> -> vector<8x128xf32>
    %57 = arith.addf %52, %56 : vector<8x128xf32>
    %c8_59 = arith.constant 8 : index
    %c0_60 = arith.constant 0 : index
    %58 = vector.load %arg14[%c8_59, %c0_60] : memref<16x128xf32, #tpu.memory_space<vmem>>, vector<8x128xf32>
    %c2_61 = arith.constant 2 : index
    %c0_62 = arith.constant 0 : index
    %c0_63 = arith.constant 0 : index
    %59 = vector.load %arg7[%c2_61, %c0_62, %c0_63] : memref<3x128x128xf32, #tpu.memory_space<vmem>>, vector<1x128x128xf32>
    %60 = vector.shape_cast %59 : vector<1x128x128xf32> to vector<128x128xf32>
    %cst_64 = arith.constant dense<0.000000e+00> : vector<8x128xf32>
    %61 = tpu.matmul %58, %60, %cst_64 {dimension_numbers = #tpu.dot_dimension_numbers<[1], [0], [0], [1], [0, 0, 1, 1], [], []>} : vector<8x128xf32>, vector<128x128xf32>, vector<8x128xf32> -> vector<8x128xf32>
    %62 = arith.addf %57, %61 : vector<8x128xf32>
    %c0_65 = arith.constant 0 : index
    %c0_66 = arith.constant 0 : index
    %63 = vector.load %arg8[%c0_65, %c0_66] : memref<1x128xf32, #tpu.memory_space<vmem>>, vector<1x128xf32>
    %64 = vector.broadcast %63 : vector<1x128xf32> to vector<8x128xf32>
    %65 = arith.addf %62, %64 : vector<8x128xf32>
    %cst_67 = arith.constant 0.000000e+00 : f32
    %66 = vector.broadcast %cst_67 : f32 to vector<8x128xf32>
    %67 = arith.maximumf %65, %66 : vector<8x128xf32>
    %c0_68 = arith.constant 0 : index
    %c0_69 = arith.constant 0 : index
    %c0_70 = arith.constant 0 : index
    %68 = vector.load %arg2[%c0_68, %c0_69, %c0_70] : memref<1x8x128xf32, #tpu.memory_space<vmem>>, vector<1x8x128xf32>
    %69 = vector.shape_cast %68 : vector<1x8x128xf32> to vector<8x128xf32>
    %c0_71 = arith.constant 0 : index
    %c0_72 = arith.constant 0 : index
    %70 = vector.load %arg9[%c0_71, %c0_72] : memref<128x128xf32, #tpu.memory_space<vmem>>, vector<128x128xf32>
    %cst_73 = arith.constant dense<0.000000e+00> : vector<8x128xf32>
    %71 = tpu.matmul %69, %70, %cst_73 {dimension_numbers = #tpu.dot_dimension_numbers<[1], [0], [0], [1], [0, 0, 1, 1], [], []>} : vector<8x128xf32>, vector<128x128xf32>, vector<8x128xf32> -> vector<8x128xf32>
    %c0_74 = arith.constant 0 : index
    %c0_75 = arith.constant 0 : index
    %72 = vector.load %arg10[%c0_74, %c0_75] : memref<1x128xf32, #tpu.memory_space<vmem>>, vector<1x128xf32>
    %73 = vector.broadcast %72 : vector<1x128xf32> to vector<8x128xf32>
    %74 = arith.addf %71, %73 : vector<8x128xf32>
    %75 = arith.addf %67, %74 : vector<8x128xf32>
    %cst_76 = arith.constant 0.000000e+00 : f32
    %76 = vector.broadcast %cst_76 : f32 to vector<8x128xf32>
    %77 = arith.maximumf %75, %76 : vector<8x128xf32>
    %c0_77 = arith.constant 0 : index
    %c0_78 = arith.constant 0 : index
    %c0_79 = arith.constant 0 : index
    %78 = vector.load %arg11[%c0_77, %c0_78, %c0_79] : memref<1x8x128xf32, #tpu.memory_space<vmem>>, vector<1x8x128xf32>
    %79 = vector.shape_cast %78 : vector<1x8x128xf32> to vector<8x128xf32>
    %80 = vector.shape_cast %77 : vector<8x128xf32> to vector<1x8x128xf32>
    tpu.vector_store %arg11[%c0_77, %c0_78, %c0_79], %80 {strides = array<i32>} : memref<1x8x128xf32, #tpu.memory_space<vmem>>, vector<1x8x128xf32>,
    return
  }
  func.func @transform_0(%arg0: i32, %arg1: i32) -> (i32, i32, i32) {
    %c0_i32 = arith.constant 0 : i32
    %c0_i32_0 = arith.constant 0 : i32
    return %arg0, %arg1, %c0_i32 : i32, i32, i32
  }
  func.func @transform_1(%arg0: i32, %arg1: i32) -> (i32, i32, i32) {
    %c0_i32 = arith.constant 0 : i32
    %c0_i32_0 = arith.constant 0 : i32
    %c0_i32_1 = arith.constant 0 : i32
    %c0_i32_2 = arith.constant 0 : i32
    return %c0_i32, %c0_i32_0, %c0_i32_1 : i32, i32, i32
  }
  func.func @transform_2(%arg0: i32, %arg1: i32) -> (i32, i32) {
    %c0_i32 = arith.constant 0 : i32
    %c0_i32_0 = arith.constant 0 : i32
    %c0_i32_1 = arith.constant 0 : i32
    return %c0_i32, %c0_i32_0 : i32, i32
  }
  func.func @transform_3(%arg0: i32, %arg1: i32) -> (i32, i32, i32) {
    %c0_i32 = arith.constant 0 : i32
    %c0_i32_0 = arith.constant 0 : i32
    %c0_i32_1 = arith.constant 0 : i32
    %c0_i32_2 = arith.constant 0 : i32
    return %c0_i32, %c0_i32_0, %c0_i32_1 : i32, i32, i32
  }
  func.func @transform_4(%arg0: i32, %arg1: i32) -> (i32, i32) {
    %c0_i32 = arith.constant 0 : i32
    %c0_i32_0 = arith.constant 0 : i32
    %c0_i32_1 = arith.constant 0 : i32
    return %c0_i32, %c0_i32_0 : i32, i32
  }
  func.func @transform_5(%arg0: i32, %arg1: i32) -> (i32, i32, i32) {
    %c0_i32 = arith.constant 0 : i32
    %c0_i32_0 = arith.constant 0 : i32
    %c0_i32_1 = arith.constant 0 : i32
    %c0_i32_2 = arith.constant 0 : i32
    return %c0_i32, %c0_i32_0, %c0_i32_1 : i32, i32, i32
  }
  func.func @transform_6(%arg0: i32, %arg1: i32) -> (i32, i32) {
    %c0_i32 = arith.constant 0 : i32
    %c0_i32_0 = arith.constant 0 : i32
    %c0_i32_1 = arith.constant 0 : i32
    return %c0_i32, %c0_i32_0 : i32, i32
  }
  func.func @transform_7(%arg0: i32, %arg1: i32) -> (i32, i32) {
    %c0_i32 = arith.constant 0 : i32
    %c0_i32_0 = arith.constant 0 : i32
    %c0_i32_1 = arith.constant 0 : i32
    return %c0_i32, %c0_i32_0 : i32, i32
  }
  func.func @transform_8(%arg0: i32, %arg1: i32) -> (i32, i32) {
    %c0_i32 = arith.constant 0 : i32
    %c0_i32_0 = arith.constant 0 : i32
    %c0_i32_1 = arith.constant 0 : i32
    return %c0_i32, %c0_i32_0 : i32, i32
  }
  func.func @transform_9(%arg0: i32, %arg1: i32) -> (i32, i32, i32) {
    %c0_i32 = arith.constant 0 : i32
    %c0_i32_0 = arith.constant 0 : i32
    return %arg0, %arg1, %c0_i32 : i32, i32, i32
  }
}

</mosaic_0001>

<llo_original>
// kernel: tpu_custom_call.1
$region0: #{tpu_custom_call.1}
  #allocation0 [shape = 'u32[]', space=smem, size = 0x4, offset = 0x4, fixed_abs, tag = 'smem constant byte address 0x4 - core index']
  #allocation1 [shape = 'u32[72,128]{1,0:T(1,128)}', space=vmem, size = 0x9000, scoped, tag = 'internal scratch']
  %s0 = inlined_call_operand.hbm [shape: f32[8,128], index: 0, kind: input, shape index: {}]
  %s1 = inlined_call_operand.hbm [shape: f32[8,128], index: 1, kind: output, shape index: {}]
  %s2 = sld [smem:[#allocation0]]
  $region18: #{tpu_custom_call.1} parent=0
    _
  %s4 = ssub.s32 1, %s2
  %s5 = scalar_select 0, %s4, %s2
  $region1: #{tpu_custom_call.1} parent=0
    #allocation2 [shape = 'u8[4096]{0}', space=vmem, size = 0x1000, scoped, tag = 'input window, operand 0, single buffered']
    #allocation3 [shape = 's32[1]{0}', space=sflag, size = 0x4, scoped, tag = 'scoped memory for tpu_custom_call.1']
    #allocation4 [shape = 's32[1]{0}', space=sflag, size = 0x4, scoped, tag = 'scoped memory for tpu_custom_call.1']
    #allocation5 [shape = 'u8[4096]{0}', space=vmem, size = 0x1000, scoped, tag = 'output window, operand 0, single buffered']
    %6 = vsyncpa [#allocation3], 0
    %7 = vsyncpa [#allocation4], 0
    // Predicated region
    $region2: #{tpu_custom_call.1} parent=1 // pred_check
      _
    $region3: #{tpu_custom_call.1} parent=1 // pred_check_branch
      %9 = sbr.rel (0) target = $region5
    $region4: #{tpu_custom_call.1} parent=1 // pred_region
      %11 = vsyncadd [#allocation3], 0
      %s13 = sshll.u32 %s0, 4
      %s14 = int_to_ptr.hbm [resolvable:$true] %s13
      %s15 = sshll.u32 [#allocation2], 4
      %s16 = int_to_ptr.vmem [resolvable:$true] %s15
      %18 = dma.hbm_to_vmem [thread:$0]  %s14, 128, %s16, [#allocation3]
    $region5: #{tpu_custom_call.1} parent=1 // pred_fallthru
      _
    // Predicated region
    $region6: #{tpu_custom_call.1} parent=1 // pred_check
      _
    $region7: #{tpu_custom_call.1} parent=1 // pred_check_branch
      %20 = sbr.rel (0) target = $region9
    $region8: #{tpu_custom_call.1} parent=1 // pred_region
      %22 = dma.done [#allocation3], 128
    $region9: #{tpu_custom_call.1} parent=1 // pred_fallthru
      _
    %v23 = vld [vmem:[#allocation2] sm:$0xff]
    %24 = vst [vmem:[#allocation5] sm:$0xff] %v23
    // Predicated region
    $region10: #{tpu_custom_call.1} parent=1 // pred_check
      _
    $region11: #{tpu_custom_call.1} parent=1 // pred_check_branch
      %26 = sbr.rel (0) target = $region13
    $region12: #{tpu_custom_call.1} parent=1 // pred_region
      %28 = vsyncadd [#allocation4], 0
      %s30 = sshll.u32 [#allocation5], 4
      %s31 = int_to_ptr.vmem [resolvable:$true] %s30
      %s32 = sshll.u32 %s1, 4
      %s33 = int_to_ptr.hbm [resolvable:$true] %s32
      %35 = dma.vmem_to_hbm [thread:$0]  %s31, 128, %s33, [#allocation4]
    $region13: #{tpu_custom_call.1} parent=1 // pred_fallthru
      _
    // Predicated region
    $region14: #{tpu_custom_call.1} parent=1 // pred_check
      _
    $region15: #{tpu_custom_call.1} parent=1 // pred_check_branch
      %37 = sbr.rel (0) target = $region17
    $region16: #{tpu_custom_call.1} parent=1 // pred_region
      %39 = dma.done [#allocation4], 128
    $region17: #{tpu_custom_call.1} parent=1 // pred_fallthru
      _
    %40 = vsyncpa [#allocation3], 1
    %41 = vsyncpa [#allocation4], 1

// kernel: tpu_custom_call.1
$region0: #{tpu_custom_call.1}
  #allocation0 [shape = 'u32[]', space=smem, size = 0x4, offset = 0x4, fixed_abs, tag = 'smem constant byte address 0x4 - core index']
  #allocation1 [shape = 'u32[72,128]{1,0:T(1,128)}', space=vmem, size = 0x9000, scoped, tag = 'internal scratch']
  #allocation2 [shape = 'f32[16,128]{1,0:T(8,128)}', space=vmem, size = 0x2000, scoped, tag = 'scratch operand']
  #allocation3 [shape = 'f32[16,128]{1,0:T(8,128)}', space=vmem, size = 0x2000, scoped, tag = 'scratch operand']
  #allocation4 [shape = 'f32[16,128]{1,0:T(8,128)}', space=vmem, size = 0x2000, scoped, tag = 'scratch operand']
  %s0 = inlined_call_operand.hbm [shape: f32[2,16,128], index: 0, kind: input, shape index: {}]
  %s1 = inlined_call_operand.hbm [shape: f32[3,128,128], index: 1, kind: input, shape index: {}]
  %s2 = inlined_call_operand.vmem [shape: f32[1,128], index: 2, kind: input, shape index: {}]
  %s3 = inlined_call_operand.hbm [shape: f32[3,128,128], index: 3, kind: input, shape index: {}]
  %s4 = inlined_call_operand.vmem [shape: f32[1,128], index: 4, kind: input, shape index: {}]
  %s5 = inlined_call_operand.hbm [shape: f32[3,128,128], index: 5, kind: input, shape index: {}]
  %s6 = inlined_call_operand.vmem [shape: f32[1,128], index: 6, kind: input, shape index: {}]
  %s7 = inlined_call_operand.hbm [shape: f32[128,128], index: 7, kind: input, shape index: {}]
  %s8 = inlined_call_operand.vmem [shape: f32[1,128], index: 8, kind: input, shape index: {}]
  %s9 = inlined_call_operand.hbm [shape: f32[2,16,128], index: 9, kind: output, shape index: {}]
  %s10 = sld [smem:[#allocation0]]
  $region97: #{tpu_custom_call.1} parent=0
    _
  %s12 = ssub.s32 1, %s10
  %s13 = scalar_select 0, %s12, %s10
  $region1: #{tpu_custom_call.1} parent=0
    #allocation5 [shape = 'u8[8192]{0}', space=vmem, size = 0x2000, scoped, tag = 'input window, operand 0']
    #allocation6 [shape = 's32[2]{0}', space=sflag, size = 0x8, scoped, tag = 'scoped memory for tpu_custom_call.1']
    #allocation7 [shape = 's32[2]{0}', space=sflag, size = 0x8, scoped, tag = 'scoped memory for tpu_custom_call.1']
    #allocation8 [shape = 'u8[196608]{0}', space=vmem, size = 0x30000, scoped, tag = 'input window, operand 1, single buffered']
    #allocation9 [shape = 's32[1]{0}', space=sflag, size = 0x4, scoped, tag = 'scoped memory for tpu_custom_call.1']
    #allocation10 [shape = 'u8[196608]{0}', space=vmem, size = 0x30000, scoped, tag = 'input window, operand 3, single buffered']
    #allocation11 [shape = 'u8[196608]{0}', space=vmem, size = 0x30000, scoped, tag = 'input window, operand 5, single buffered']
    #allocation12 [shape = 's32[1]{0}', space=sflag, size = 0x4, scoped, tag = 'scoped memory for tpu_custom_call.1']
    #allocation13 [shape = 'u8[65536]{0}', space=vmem, size = 0x10000, scoped, tag = 'input window, operand 7, single buffered']
    #allocation14 [shape = 'u8[8192]{0}', space=vmem, size = 0x2000, scoped, tag = 'output window, operand 0']
    %14 = vsyncpa [#allocation6], 0
    %s15 = scalar_lea.sflag [#allocation6], 1
    %16 = vsyncpa %s15, 0
    %17 = vsyncpa [#allocation9], 0
    %18 = vsyncpa [#allocation12], 0
    %19 = vsyncpa [#allocation7], 0
    %s20 = scalar_lea.sflag [#allocation7], 1
    %21 = vsyncpa %s20, 0
    loop: start=0, step=1, limit=6
    $region2: #{tpu_custom_call.1} parent=1 // loop_pre_header
      _
    $region3: #{tpu_custom_call.1} parent=1 // loop_header
      %s23 = sphi 0, %s27
      %p24 = scmp.ge.s32.totalorder %s23, 6
      %s30 = sphi 0, %s42
      %s31 = sphi 0, %s38
      %s32 = sphi 0, %s30
      %s33 = sphi 0, %s31
      %s34 = sphi 0, %s32
      %s35 = sphi 0, %s33
      %s47 = sphi 0, %s49
      %s50 = sphi 0, %s47
      %s51 = sphi 0, %s50
      %s67 = sphi 0, %s51
      %s71 = sphi 0, %s71
      %s73 = sphi 0, %s71
      %s74 = sphi 0, %s73
      %s88 = sphi 0, %s74
      %s92 = sphi 0, %s92
      %s94 = sphi 0, %s92
      %s95 = sphi 0, %s94
      %s109 = sphi 0, %s95
      %s113 = sphi 0, %s113
      %s115 = sphi 0, %s113
      %s116 = sphi 0, %s115
      %s130 = sphi 0, %s116
      %s134 = sphi 0, %s134
      %s136 = sphi 0, %s134
      %s137 = sphi 0, %s136
      %s151 = sphi 0, %s137
      %s155 = sphi 0, %s155
      %s157 = sphi 0, %s155
      %s158 = sphi 0, %s157
      %s172 = sphi 0, %s158
      %s176 = sphi 0, %s176
      %s178 = sphi 0, %s176
      %s179 = sphi 0, %s178
      %s193 = sphi 0, %s179
      %s197 = sphi 0, %s197
      %s199 = sphi 0, %s197
      %s200 = sphi 0, %s199
      %s214 = sphi 0, %s200
      %s218 = sphi 0, %s218
      %s220 = sphi 0, %s218
      %s221 = sphi 0, %s220
      %s235 = sphi 0, %s221
      %s243 = sphi 0, %s245
      %s246 = sphi 0, %s243
      %s247 = sphi 0, %s246
      %s263 = sphi 0, %s247
    $region4: #{tpu_custom_call.1} parent=1 // loop_header_branch
      %26 = sbr.rel (%p24) target = $region8
    $region5: #{tpu_custom_call.1} parent=1 // loop_body
      %s28 = ssub.s32 %s23, 1
      %s29 = ssub.s32 %s23, 2
      %s36 = sadd.s32 1, %s31
      %p37 = scmp.ge.s32.totalorder %s36, 2
      %s38 = scalar_select %p37, 0, %s36
      %s39 = sadd.s32 1, %s30
      %s40 = scalar_select %p37, %s39, %s30
      %p41 = scmp.ge.s32.totalorder %s40, 2
      %s42 = scalar_select %p41, 0, %s40
      %s43 = ssub.s32 %s30, %s42
      %s44 = ssub.s32 %s31, %s38
      %s45 = sor.u32 %s43, %s44
      %p46 = scmp.eq.s32.totalorder %s45, 0
      %s48 = sadd.s32 %s47, 1
      %s49 = scalar_select %p46, %s47, %s48
      %p52 = pneg %p46
      %p53 = scmp.eq.s32.totalorder %s23, 3
      %p54 = por %p52, %p53
      %p55 = scmp.ne.s32.totalorder %s47, %s50
      %p56 = scmp.eq.s32.totalorder %s23, 0
      %p57 = por %p55, %p56
      %p58 = scmp.ne.s32.totalorder %s47, %s50
      %p59 = scmp.eq.s32.totalorder %s28, 3
      %p60 = por %p58, %p59
      %p61 = scmp.ne.s32.totalorder %s50, %s51
      %p62 = scmp.eq.s32.totalorder %s28, 0
      %p63 = por %p61, %p62
      %p64 = scmp.ne.s32.totalorder %s50, %s51
      %p65 = scmp.eq.s32.totalorder %s29, 3
      %p66 = por %p64, %p65
      %p68 = scmp.ne.s32.totalorder %s51, %s67
      %p69 = scmp.eq.s32.totalorder %s29, 0
      %p70 = por %p68, %p69
      %s72 = sadd.s32 %s71, 1
      %p75 = scmp.eq.s32.totalorder %s23, 3
      %p76 = scmp.ne.s32.totalorder %s71, %s73
      %p77 = scmp.eq.s32.totalorder %s23, 0
      %p78 = por %p76, %p77
      %p79 = scmp.ne.s32.totalorder %s71, %s73
      %p80 = scmp.eq.s32.totalorder %s28, 3
      %p81 = por %p79, %p80
      %p82 = scmp.ne.s32.totalorder %s73, %s74
      %p83 = scmp.eq.s32.totalorder %s28, 0
      %p84 = por %p82, %p83
      %p85 = scmp.ne.s32.totalorder %s73, %s74
      %p86 = scmp.eq.s32.totalorder %s29, 3
      %p87 = por %p85, %p86
      %p89 = scmp.ne.s32.totalorder %s74, %s88
      %p90 = scmp.eq.s32.totalorder %s29, 0
      %p91 = por %p89, %p90
      %s93 = sadd.s32 %s92, 1
      %p96 = scmp.eq.s32.totalorder %s23, 3
      %p97 = scmp.ne.s32.totalorder %s92, %s94
      %p98 = scmp.eq.s32.totalorder %s23, 0
      %p99 = por %p97, %p98
      %p100 = scmp.ne.s32.totalorder %s92, %s94
      %p101 = scmp.eq.s32.totalorder %s28, 3
      %p102 = por %p100, %p101
      %p103 = scmp.ne.s32.totalorder %s94, %s95
      %p104 = scmp.eq.s32.totalorder %s28, 0
      %p105 = por %p103, %p104
      %p106 = scmp.ne.s32.totalorder %s94, %s95
      %p107 = scmp.eq.s32.totalorder %s29, 3
      %p108 = por %p106, %p107
      %p110 = scmp.ne.s32.totalorder %s95, %s109
      %p111 = scmp.eq.s32.totalorder %s29, 0
      %p112 = por %p110, %p111
      %s114 = sadd.s32 %s113, 1
      %p117 = scmp.eq.s32.totalorder %s23, 3
      %p118 = scmp.ne.s32.totalorder %s113, %s115
      %p119 = scmp.eq.s32.totalorder %s23, 0
      %p120 = por %p118, %p119
      %p121 = scmp.ne.s32.totalorder %s113, %s115
      %p122 = scmp.eq.s32.totalorder %s28, 3
      %p123 = por %p121, %p122
      %p124 = scmp.ne.s32.totalorder %s115, %s116
      %p125 = scmp.eq.s32.totalorder %s28, 0
      %p126 = por %p124, %p125
      %p127 = scmp.ne.s32.totalorder %s115, %s116
      %p128 = scmp.eq.s32.totalorder %s29, 3
      %p129 = por %p127, %p128
      %p131 = scmp.ne.s32.totalorder %s116, %s130
      %p132 = scmp.eq.s32.totalorder %s29, 0
      %p133 = por %p131, %p132
      %s135 = sadd.s32 %s134, 1
      %p138 = scmp.eq.s32.totalorder %s23, 3
      %p139 = scmp.ne.s32.totalorder %s134, %s136
      %p140 = scmp.eq.s32.totalorder %s23, 0
      %p141 = por %p139, %p140
      %p142 = scmp.ne.s32.totalorder %s134, %s136
      %p143 = scmp.eq.s32.totalorder %s28, 3
      %p144 = por %p142, %p143
      %p145 = scmp.ne.s32.totalorder %s136, %s137
      %p146 = scmp.eq.s32.totalorder %s28, 0
      %p147 = por %p145, %p146
      %p148 = scmp.ne.s32.totalorder %s136, %s137
      %p149 = scmp.eq.s32.totalorder %s29, 3
      %p150 = por %p148, %p149
      %p152 = scmp.ne.s32.totalorder %s137, %s151
      %p153 = scmp.eq.s32.totalorder %s29, 0
      %p154 = por %p152, %p153
      %s156 = sadd.s32 %s155, 1
      %p159 = scmp.eq.s32.totalorder %s23, 3
      %p160 = scmp.ne.s32.totalorder %s155, %s157
      %p161 = scmp.eq.s32.totalorder %s23, 0
      %p162 = por %p160, %p161
      %p163 = scmp.ne.s32.totalorder %s155, %s157
      %p164 = scmp.eq.s32.totalorder %s28, 3
      %p165 = por %p163, %p164
      %p166 = scmp.ne.s32.totalorder %s157, %s158
      %p167 = scmp.eq.s32.totalorder %s28, 0
      %p168 = por %p166, %p167
      %p169 = scmp.ne.s32.totalorder %s157, %s158
      %p170 = scmp.eq.s32.totalorder %s29, 3
      %p171 = por %p169, %p170
      %p173 = scmp.ne.s32.totalorder %s158, %s172
      %p174 = scmp.eq.s32.totalorder %s29, 0
      %p175 = por %p173, %p174
      %s177 = sadd.s32 %s176, 1
      %p180 = scmp.eq.s32.totalorder %s23, 3
      %p181 = scmp.ne.s32.totalorder %s176, %s178
      %p182 = scmp.eq.s32.totalorder %s23, 0
      %p183 = por %p181, %p182
      %p184 = scmp.ne.s32.totalorder %s176, %s178
      %p185 = scmp.eq.s32.totalorder %s28, 3
      %p186 = por %p184, %p185
      %p187 = scmp.ne.s32.totalorder %s178, %s179
      %p188 = scmp.eq.s32.totalorder %s28, 0
      %p189 = por %p187, %p188
      %p190 = scmp.ne.s32.totalorder %s178, %s179
      %p191 = scmp.eq.s32.totalorder %s29, 3
      %p192 = por %p190, %p191
      %p194 = scmp.ne.s32.totalorder %s179, %s193
      %p195 = scmp.eq.s32.totalorder %s29, 0
      %p196 = por %p194, %p195
      %s198 = sadd.s32 %s197, 1
      %p201 = scmp.eq.s32.totalorder %s23, 3
      %p202 = scmp.ne.s32.totalorder %s197, %s199
      %p203 = scmp.eq.s32.totalorder %s23, 0
      %p204 = por %p202, %p203
      %p205 = scmp.ne.s32.totalorder %s197, %s199
      %p206 = scmp.eq.s32.totalorder %s28, 3
      %p207 = por %p205, %p206
      %p208 = scmp.ne.s32.totalorder %s199, %s200
      %p209 = scmp.eq.s32.totalorder %s28, 0
      %p210 = por %p208, %p209
      %p211 = scmp.ne.s32.totalorder %s199, %s200
      %p212 = scmp.eq.s32.totalorder %s29, 3
      %p213 = por %p211, %p212
      %p215 = scmp.ne.s32.totalorder %s200, %s214
      %p216 = scmp.eq.s32.totalorder %s29, 0
      %p217 = por %p215, %p216
      %s219 = sadd.s32 %s218, 1
      %p222 = scmp.eq.s32.totalorder %s23, 3
      %p223 = scmp.ne.s32.totalorder %s218, %s220
      %p224 = scmp.eq.s32.totalorder %s23, 0
      %p225 = por %p223, %p224
      %p226 = scmp.ne.s32.totalorder %s218, %s220
      %p227 = scmp.eq.s32.totalorder %s28, 3
      %p228 = por %p226, %p227
      %p229 = scmp.ne.s32.totalorder %s220, %s221
      %p230 = scmp.eq.s32.totalorder %s28, 0
      %p231 = por %p229, %p230
      %p232 = scmp.ne.s32.totalorder %s220, %s221
      %p233 = scmp.eq.s32.totalorder %s29, 3
      %p234 = por %p232, %p233
      %p236 = scmp.ne.s32.totalorder %s221, %s235
      %p237 = scmp.eq.s32.totalorder %s29, 0
      %p238 = por %p236, %p237
      %s239 = ssub.s32 %s30, %s42
      %s240 = ssub.s32 %s31, %s38
      %s241 = sor.u32 %s239, %s240
      %p242 = scmp.eq.s32.totalorder %s241, 0
      %s244 = sadd.s32 %s243, 1
      %s245 = scalar_select %p242, %s243, %s244
      %p248 = pneg %p242
      %p249 = scmp.eq.s32.totalorder %s23, 3
      %p250 = por %p248, %p249
      %p251 = scmp.ne.s32.totalorder %s243, %s246
      %p252 = scmp.eq.s32.totalorder %s23, 0
      %p253 = por %p251, %p252
      %p254 = scmp.ne.s32.totalorder %s243, %s246
      %p255 = scmp.eq.s32.totalorder %s28, 3
      %p256 = por %p254, %p255
      %p257 = scmp.ne.s32.totalorder %s246, %s247
      %p258 = scmp.eq.s32.totalorder %s28, 0
      %p259 = por %p257, %p258
      %p260 = scmp.ne.s32.totalorder %s246, %s247
      %p261 = scmp.eq.s32.totalorder %s29, 3
      %p262 = por %p260, %p261
      %p264 = scmp.ne.s32.totalorder %s247, %s263
      %p265 = scmp.eq.s32.totalorder %s29, 0
      %p266 = por %p264, %p265
      %p267 = scmp.le.s32.totalorder 1, %s23
      %p268 = scmp.lt.s32.totalorder %s23, 5
      %p269 = pnand %p267, %p268
      %p270 = pneg %p269
      // Predicated region
      $region9: #{tpu_custom_call.1} parent=5 // pred_check
        _
      $region10: #{tpu_custom_call.1} parent=5 // pred_check_branch
        %272 = sbr.rel (%p269) target = $region12
      $region11: #{tpu_custom_call.1} parent=5 // pred_region
        %s273 = ssub.s32 %s23, 1
        // Predicated region
        $region13: #{tpu_custom_call.1} parent=11 // pred_check
          %p274 = pneg %p84
        $region14: #{tpu_custom_call.1} parent=11 // pred_check_branch
          %276 = sbr.rel (%p274) target = $region16
        $region15: #{tpu_custom_call.1} parent=11 // pred_region
          %278 = vsyncadd [#allocation9], 0
          %s279 = sshll.u32 %s1, 4
          %s280 = int_to_ptr.hbm [resolvable:$true] %s279
          %s281 = sshll.u32 [#allocation8], 4
          %s282 = int_to_ptr.vmem [resolvable:$true] %s281
          %287 = dma.hbm_to_vmem [thread:$0]  %s280, 6144, %s282, [#allocation9], 128, 128, 8
        $region16: #{tpu_custom_call.1} parent=11 // pred_fallthru
          _
        // Predicated region
        $region17: #{tpu_custom_call.1} parent=11 // pred_check
          %p288 = pneg %p105
        $region18: #{tpu_custom_call.1} parent=11 // pred_check_branch
          %290 = sbr.rel (%p288) target = $region20
        $region19: #{tpu_custom_call.1} parent=11 // pred_region
          _
        $region20: #{tpu_custom_call.1} parent=11 // pred_fallthru
          _
        // Predicated region
        $region21: #{tpu_custom_call.1} parent=11 // pred_check
          %p291 = pneg %p126
        $region22: #{tpu_custom_call.1} parent=11 // pred_check_branch
          %293 = sbr.rel (%p291) target = $region24
        $region23: #{tpu_custom_call.1} parent=11 // pred_region
          %295 = vsyncadd [#allocation9], 0
          %s296 = sshll.u32 %s3, 4
          %s297 = int_to_ptr.hbm [resolvable:$true] %s296
          %s298 = sshll.u32 [#allocation10], 4
          %s299 = int_to_ptr.vmem [resolvable:$true] %s298
          %304 = dma.hbm_to_vmem [thread:$0]  %s297, 6144, %s299, [#allocation9], 128, 128, 8
        $region24: #{tpu_custom_call.1} parent=11 // pred_fallthru
          _
        // Predicated region
        $region25: #{tpu_custom_call.1} parent=11 // pred_check
          %p305 = pneg %p147
        $region26: #{tpu_custom_call.1} parent=11 // pred_check_branch
          %307 = sbr.rel (%p305) target = $region28
        $region27: #{tpu_custom_call.1} parent=11 // pred_region
          _
        $region28: #{tpu_custom_call.1} parent=11 // pred_fallthru
          _
        // Predicated region
        $region29: #{tpu_custom_call.1} parent=11 // pred_check
          %p308 = pneg %p168
        $region30: #{tpu_custom_call.1} parent=11 // pred_check_branch
          %310 = sbr.rel (%p308) target = $region32
        $region31: #{tpu_custom_call.1} parent=11 // pred_region
          %312 = vsyncadd [#allocation12], 0
          %s313 = sshll.u32 %s5, 4
          %s314 = int_to_ptr.hbm [resolvable:$true] %s313
          %s315 = sshll.u32 [#allocation11], 4
          %s316 = int_to_ptr.vmem [resolvable:$true] %s315
          %321 = dma.hbm_to_vmem [thread:$0]  %s314, 6144, %s316, [#allocation12], 128, 128, 8
        $region32: #{tpu_custom_call.1} parent=11 // pred_fallthru
          _
        // Predicated region
        $region33: #{tpu_custom_call.1} parent=11 // pred_check
          %p322 = pneg %p189
        $region34: #{tpu_custom_call.1} parent=11 // pred_check_branch
          %324 = sbr.rel (%p322) target = $region36
        $region35: #{tpu_custom_call.1} parent=11 // pred_region
          _
        $region36: #{tpu_custom_call.1} parent=11 // pred_fallthru
          _
        // Predicated region
        $region37: #{tpu_custom_call.1} parent=11 // pred_check
          %p325 = pneg %p210
        $region38: #{tpu_custom_call.1} parent=11 // pred_check_branch
          %327 = sbr.rel (%p325) target = $region40
        $region39: #{tpu_custom_call.1} parent=11 // pred_region
          %329 = vsyncadd [#allocation12], 0
          %s330 = sshll.u32 %s7, 4
          %s331 = int_to_ptr.hbm [resolvable:$true] %s330
          %s332 = sshll.u32 [#allocation13], 4
          %s333 = int_to_ptr.vmem [resolvable:$true] %s332
          %338 = dma.hbm_to_vmem [thread:$0]  %s331, 2048, %s333, [#allocation12], 128, 128, 8
        $region40: #{tpu_custom_call.1} parent=11 // pred_fallthru
          _
        // Predicated region
        $region41: #{tpu_custom_call.1} parent=11 // pred_check
          %p339 = pneg %p231
        $region42: #{tpu_custom_call.1} parent=11 // pred_check_branch
          %341 = sbr.rel (%p339) target = $region44
        $region43: #{tpu_custom_call.1} parent=11 // pred_region
          _
        $region44: #{tpu_custom_call.1} parent=11 // pred_fallthru
          _
      $region12: #{tpu_custom_call.1} parent=5 // pred_fallthru
        _
      %p342 = scmp.lt.s32.totalorder %s23, 4
      // Predicated region
      $region45: #{tpu_custom_call.1} parent=5 // pred_check
        %p343 = pneg %p342
      $region46: #{tpu_custom_call.1} parent=5 // pred_check_branch
        %345 = sbr.rel (%p343) target = $region48
      $region47: #{tpu_custom_call.1} parent=5 // pred_region
        // Predicated region
        $region49: #{tpu_custom_call.1} parent=47 // pred_check
          %p346 = pneg %p57
        $region50: #{tpu_custom_call.1} parent=47 // pred_check_branch
          %348 = sbr.rel (%p346) target = $region52
        $region51: #{tpu_custom_call.1} parent=47 // pred_region
          %s349 = sand.u32 %s47, 1
          %s350 = scalar_lea.sflag [#allocation6], %s349
          %s351 = sand.u32 %s47, 1
          %s352 = smul.addr %s351, 8
          %s353 = scalar_lea.vmem [#allocation5], %s352
          %355 = vsyncadd %s350, 0
          %s356 = smul.addr %s30, 2
          %s357 = sadd.s32 %s31, %s356
          %s358 = smul.addr %s357, 8
          %s359 = scalar_lea.hbm %s0, %s358
          %s361 = sshll.u32 %s359, 4
          %s362 = int_to_ptr.hbm [resolvable:$true] %s361
          %s363 = sshll.u32 %s353, 4
          %s364 = int_to_ptr.vmem [resolvable:$true] %s363
          %366 = dma.hbm_to_vmem [thread:$0]  %s362, 128, %s364, %s350
        $region52: #{tpu_custom_call.1} parent=47 // pred_fallthru
          _
      $region48: #{tpu_custom_call.1} parent=5 // pred_fallthru
        _
      %p367 = scmp.le.s32.totalorder 1, %s23
      %p368 = scmp.lt.s32.totalorder %s23, 5
      %p369 = pnand %p367, %p368
      %p370 = pneg %p369
      // Predicated region
      $region53: #{tpu_custom_call.1} parent=5 // pred_check
        _
      $region54: #{tpu_custom_call.1} parent=5 // pred_check_branch
        %372 = sbr.rel (%p369) target = $region56
      $region55: #{tpu_custom_call.1} parent=5 // pred_region
        %s373 = ssub.s32 %s23, 1
        %s374 = sand.u32 %s50, 1
        %s375 = scalar_lea.sflag [#allocation6], %s374
        %s376 = sand.u32 %s50, 1
        %s377 = smul.addr %s376, 8
        %s378 = scalar_lea.vmem [#allocation5], %s377
        // Predicated region
        $region57: #{tpu_custom_call.1} parent=55 // pred_check
          %p379 = pneg %p63
        $region58: #{tpu_custom_call.1} parent=55 // pred_check_branch
          %381 = sbr.rel (%p379) target = $region60
        $region59: #{tpu_custom_call.1} parent=55 // pred_region
          %383 = dma.done %s375, 128
        $region60: #{tpu_custom_call.1} parent=55 // pred_fallthru
          _
        // Predicated region
        $region61: #{tpu_custom_call.1} parent=55 // pred_check
          %p384 = pneg %p84
        $region62: #{tpu_custom_call.1} parent=55 // pred_check_branch
          %386 = sbr.rel (%p384) target = $region64
        $region63: #{tpu_custom_call.1} parent=55 // pred_region
          %388 = dma.done [#allocation9], 6144
        $region64: #{tpu_custom_call.1} parent=55 // pred_fallthru
          _
        // Predicated region
        $region65: #{tpu_custom_call.1} parent=55 // pred_check
          %p389 = pneg %p126
        $region66: #{tpu_custom_call.1} parent=55 // pred_check_branch
          %391 = sbr.rel (%p389) target = $region68
        $region67: #{tpu_custom_call.1} parent=55 // pred_region
          %393 = dma.done [#allocation9], 6144
        $region68: #{tpu_custom_call.1} parent=55 // pred_fallthru
          _
        // Predicated region
        $region69: #{tpu_custom_call.1} parent=55 // pred_check
          %p394 = pneg %p168
        $region70: #{tpu_custom_call.1} parent=55 // pred_check_branch
          %396 = sbr.rel (%p394) target = $region72
        $region71: #{tpu_custom_call.1} parent=55 // pred_region
          %398 = dma.done [#allocation12], 6144
        $region72: #{tpu_custom_call.1} parent=55 // pred_fallthru
          _
        // Predicated region
        $region73: #{tpu_custom_call.1} parent=55 // pred_check
          %p399 = pneg %p210
        $region74: #{tpu_custom_call.1} parent=55 // pred_check_branch
          %401 = sbr.rel (%p399) target = $region76
        $region75: #{tpu_custom_call.1} parent=55 // pred_region
          %403 = dma.done [#allocation12], 2048
        $region76: #{tpu_custom_call.1} parent=55 // pred_fallthru
          _
        %s404 = sand.u32 %s50, 1
        %s405 = scalar_lea.sflag [#allocation6], %s404
        %s406 = sand.u32 %s50, 1
        %s407 = smul.addr %s406, 8
        %s408 = scalar_lea.vmem [#allocation5], %s407
        %p409 = pneg %p63
        %p410 = pneg %p60
        %p411 = pneg %p84
        %p412 = pneg %p81
        %p413 = pneg %p105
        %p414 = pneg %p102
        %p415 = pneg %p126
        %p416 = pneg %p123
        %p417 = pneg %p147
        %p418 = pneg %p144
        %p419 = pneg %p168
        %p420 = pneg %p165
        %p421 = pneg %p189
        %p422 = pneg %p186
        %p423 = pneg %p210
        %p424 = pneg %p207
        %p425 = pneg %p231
        %p426 = pneg %p228
        %p427 = pneg %p259
        %p428 = pneg %p256
        %s429 = sand.u32 %s246, 1
        %s430 = scalar_lea.sflag [#allocation7], %s429
        %s431 = sand.u32 %s246, 1
        %s432 = smul.addr %s431, 8
        %s433 = scalar_lea.vmem [#allocation14], %s432
        %p434 = scmp.eq.s32.totalorder %s33, 0
        // Predicated region
        $region77: #{tpu_custom_call.1} parent=55 // pred_check
          %p435 = pneg %p434
        $region78: #{tpu_custom_call.1} parent=55 // pred_check_branch
          %437 = sbr.rel (%p435) target = $region80
        $region79: #{tpu_custom_call.1} parent=55 // pred_region
          %438 = vst [vmem:[#allocation2] sm:$0xff] 0.0
          %439 = vst [vmem:[#allocation3] sm:$0xff] 0.0
          %440 = vst [vmem:[#allocation4] sm:$0xff] 0.0
        $region80: #{tpu_custom_call.1} parent=55 // pred_fallthru
          _
        %p441 = scmp.gt.s32.totalorder %s33, 0
        // Predicated region
        $region81: #{tpu_custom_call.1} parent=55 // pred_check
          %p442 = pneg %p441
        $region82: #{tpu_custom_call.1} parent=55 // pred_check_branch
          %444 = sbr.rel (%p442) target = $region84
        $region83: #{tpu_custom_call.1} parent=55 // pred_region
          %v445 = vld [vmem:[#allocation2 + $0xc] sm:$0xf]
          %446 = vst [vmem:[#allocation2 + $0x4] sm:$0xf] %v445
          %v447 = vld [vmem:[#allocation3 + $0xc] sm:$0xf]
          %448 = vst [vmem:[#allocation3 + $0x4] sm:$0xf] %v447
          %v449 = vld [vmem:[#allocation4 + $0xc] sm:$0xf]
          %450 = vst [vmem:[#allocation4 + $0x4] sm:$0xf] %v449
        $region84: #{tpu_custom_call.1} parent=55 // pred_fallthru
          _
        %v451 = vld [vmem:[%s378] sm:$0xff]
        %452 = vst [vmem:[#allocation2 + $0x8] sm:$0xff] %v451
        %v453 = vld [vmem:[#allocation2 + $0x4] sm:$0xff]
        %v454 = vld [vmem:[#allocation8] sm:$0xff]
        %v455 = vld [vmem:[#allocation8 + $0x8] sm:$0xff]
        %v456 = vld [vmem:[#allocation8 + $0x10] sm:$0xff]
        %v457 = vld [vmem:[#allocation8 + $0x18] sm:$0xff]
        %v458 = vld [vmem:[#allocation8 + $0x20] sm:$0xff]
        %v459 = vld [vmem:[#allocation8 + $0x28] sm:$0xff]
        %v460 = vld [vmem:[#allocation8 + $0x30] sm:$0xff]
        %v461 = vld [vmem:[#allocation8 + $0x38] sm:$0xff]
        %v462 = vld [vmem:[#allocation8 + $0x40] sm:$0xff]
        %v463 = vld [vmem:[#allocation8 + $0x48] sm:$0xff]
        %v464 = vld [vmem:[#allocation8 + $0x50] sm:$0xff]
        %v465 = vld [vmem:[#allocation8 + $0x58] sm:$0xff]
        %v466 = vld [vmem:[#allocation8 + $0x60] sm:$0xff]
        %v467 = vld [vmem:[#allocation8 + $0x68] sm:$0xff]
        %v468 = vld [vmem:[#allocation8 + $0x70] sm:$0xff]
        %v469 = vld [vmem:[#allocation8 + $0x78] sm:$0xff]
        %v470 = vld [vmem:[#allocation2 + $0x6] sm:$0xff]
        %s471 = scalar_lea.vmem [#allocation8], 128
        %v472 = vld [vmem:[%s471] sm:$0xff]
        %v473 = vld [vmem:[%s471 + $0x8] sm:$0xff]
        %v474 = vld [vmem:[%s471 + $0x10] sm:$0xff]
        %v475 = vld [vmem:[%s471 + $0x18] sm:$0xff]
        %v476 = vld [vmem:[%s471 + $0x20] sm:$0xff]
        %v477 = vld [vmem:[%s471 + $0x28] sm:$0xff]
        %v478 = vld [vmem:[%s471 + $0x30] sm:$0xff]
        %v479 = vld [vmem:[%s471 + $0x38] sm:$0xff]
        %v480 = vld [vmem:[%s471 + $0x40] sm:$0xff]
        %v481 = vld [vmem:[%s471 + $0x48] sm:$0xff]
        %v482 = vld [vmem:[%s471 + $0x50] sm:$0xff]
        %v483 = vld [vmem:[%s471 + $0x58] sm:$0xff]
        %v484 = vld [vmem:[%s471 + $0x60] sm:$0xff]
        %v485 = vld [vmem:[%s471 + $0x68] sm:$0xff]
        %v486 = vld [vmem:[%s471 + $0x70] sm:$0xff]
        %v487 = vld [vmem:[%s471 + $0x78] sm:$0xff]
        %488 = vmatpush.msra.mxu0 %v487
        %489 = vmatpush.msra.mxu0 %v486
        %490 = vmatpush.msra.mxu0 %v485
        %491 = vmatpush.msra.mxu0 %v484
        %492 = vmatpush.msra.mxu0 %v483
        %493 = vmatpush.msra.mxu0 %v482
        %494 = vmatpush.msra.mxu0 %v481
        %495 = vmatpush.msra.mxu0 %v480
        %496 = vmatpush.msra.mxu0 %v479
        %497 = vmatpush.msra.mxu0 %v478
        %498 = vmatpush.msra.mxu0 %v477
        %499 = vmatpush.msra.mxu0 %v476
        %500 = vmatpush.msra.mxu0 %v475
        %501 = vmatpush.msra.mxu0 %v474
        %502 = vmatpush.msra.mxu0 %v473
        %503 = vmatpush.msra.mxu0 %v472
        %504 = vmatmul.f32.gmra.mxu0 %v470
        %v505 = vpop.f32.mrf.mxu0
        %v506 = vadd.f32 0.0, %v505
        %507 = vdwg.mxu0
        %508 = vmatpush.msra.mxu0 %v469
        %509 = vmatpush.msra.mxu0 %v468
        %510 = vmatpush.msra.mxu0 %v467
        %511 = vmatpush.msra.mxu0 %v466
        %512 = vmatpush.msra.mxu0 %v465
        %513 = vmatpush.msra.mxu0 %v464
        %514 = vmatpush.msra.mxu0 %v463
        %515 = vmatpush.msra.mxu0 %v462
        %516 = vmatpush.msra.mxu0 %v461
        %517 = vmatpush.msra.mxu0 %v460
        %518 = vmatpush.msra.mxu0 %v459
        %519 = vmatpush.msra.mxu0 %v458
        %520 = vmatpush.msra.mxu0 %v457
        %521 = vmatpush.msra.mxu0 %v456
        %522 = vmatpush.msra.mxu0 %v455
        %523 = vmatpush.msra.mxu0 %v454
        %524 = vmatmul.f32.gmra.mxu0 %v453
        %v525 = vpop.f32.mrf.mxu0
        %v526 = vadd.f32 %v506, %v525
        %527 = vdwg.mxu0
        %v528 = vld [vmem:[#allocation2 + $0x8] sm:$0xff]
        %s529 = scalar_lea.vmem [#allocation8], 256
        %v530 = vld [vmem:[%s529] sm:$0xff]
        %v531 = vld [vmem:[%s529 + $0x8] sm:$0xff]
        %v532 = vld [vmem:[%s529 + $0x10] sm:$0xff]
        %v533 = vld [vmem:[%s529 + $0x18] sm:$0xff]
        %v534 = vld [vmem:[%s529 + $0x20] sm:$0xff]
        %v535 = vld [vmem:[%s529 + $0x28] sm:$0xff]
        %v536 = vld [vmem:[%s529 + $0x30] sm:$0xff]
        %v537 = vld [vmem:[%s529 + $0x38] sm:$0xff]
        %v538 = vld [vmem:[%s529 + $0x40] sm:$0xff]
        %v539 = vld [vmem:[%s529 + $0x48] sm:$0xff]
        %v540 = vld [vmem:[%s529 + $0x50] sm:$0xff]
        %v541 = vld [vmem:[%s529 + $0x58] sm:$0xff]
        %v542 = vld [vmem:[%s529 + $0x60] sm:$0xff]
        %v543 = vld [vmem:[%s529 + $0x68] sm:$0xff]
        %v544 = vld [vmem:[%s529 + $0x70] sm:$0xff]
        %v545 = vld [vmem:[%s529 + $0x78] sm:$0xff]
        %546 = vmatpush.msra.mxu0 %v545
        %547 = vmatpush.msra.mxu0 %v544
        %548 = vmatpush.msra.mxu0 %v543
        %549 = vmatpush.msra.mxu0 %v542
        %550 = vmatpush.msra.mxu0 %v541
        %551 = vmatpush.msra.mxu0 %v540
        %552 = vmatpush.msra.mxu0 %v539
        %553 = vmatpush.msra.mxu0 %v538
        %554 = vmatpush.msra.mxu0 %v537
        %555 = vmatpush.msra.mxu0 %v536
        %556 = vmatpush.msra.mxu0 %v535
        %557 = vmatpush.msra.mxu0 %v534
        %558 = vmatpush.msra.mxu0 %v533
        %559 = vmatpush.msra.mxu0 %v532
        %560 = vmatpush.msra.mxu0 %v531
        %561 = vmatpush.msra.mxu0 %v530
        %562 = vmatmul.f32.gmra.mxu0 %v528
        %v563 = vpop.f32.mrf.mxu0
        %v564 = vadd.f32 0.0, %v563
        %565 = vdwg.mxu0
        %v566 = vadd.f32 %v526, %v564
        %v567 = vld [vmem:[%s2] sm:$0x1]
        %v569 = vperm.slane %v567, 0
        %v571 = vadd.f32 %v566, %v569
        %v572 = vmax.f32 %v571, 0.0
        %573 = vst [vmem:[#allocation3 + $0x8] sm:$0xff] %v572
        %v574 = vld [vmem:[#allocation3 + $0x4] sm:$0xff]
        %v575 = vld [vmem:[#allocation10] sm:$0xff]
        %v576 = vld [vmem:[#allocation10 + $0x8] sm:$0xff]
        %v577 = vld [vmem:[#allocation10 + $0x10] sm:$0xff]
        %v578 = vld [vmem:[#allocation10 + $0x18] sm:$0xff]
        %v579 = vld [vmem:[#allocation10 + $0x20] sm:$0xff]
        %v580 = vld [vmem:[#allocation10 + $0x28] sm:$0xff]
        %v581 = vld [vmem:[#allocation10 + $0x30] sm:$0xff]
        %v582 = vld [vmem:[#allocation10 + $0x38] sm:$0xff]
        %v583 = vld [vmem:[#allocation10 + $0x40] sm:$0xff]
        %v584 = vld [vmem:[#allocation10 + $0x48] sm:$0xff]
        %v585 = vld [vmem:[#allocation10 + $0x50] sm:$0xff]
        %v586 = vld [vmem:[#allocation10 + $0x58] sm:$0xff]
        %v587 = vld [vmem:[#allocation10 + $0x60] sm:$0xff]
        %v588 = vld [vmem:[#allocation10 + $0x68] sm:$0xff]
        %v589 = vld [vmem:[#allocation10 + $0x70] sm:$0xff]
        %v590 = vld [vmem:[#allocation10 + $0x78] sm:$0xff]
        %v591 = vld [vmem:[#allocation3 + $0x6] sm:$0xff]
        %s592 = scalar_lea.vmem [#allocation10], 128
        %v593 = vld [vmem:[%s592] sm:$0xff]
        %v594 = vld [vmem:[%s592 + $0x8] sm:$0xff]
        %v595 = vld [vmem:[%s592 + $0x10] sm:$0xff]
        %v596 = vld [vmem:[%s592 + $0x18] sm:$0xff]
        %v597 = vld [vmem:[%s592 + $0x20] sm:$0xff]
        %v598 = vld [vmem:[%s592 + $0x28] sm:$0xff]
        %v599 = vld [vmem:[%s592 + $0x30] sm:$0xff]
        %v600 = vld [vmem:[%s592 + $0x38] sm:$0xff]
        %v601 = vld [vmem:[%s592 + $0x40] sm:$0xff]
        %v602 = vld [vmem:[%s592 + $0x48] sm:$0xff]
        %v603 = vld [vmem:[%s592 + $0x50] sm:$0xff]
        %v604 = vld [vmem:[%s592 + $0x58] sm:$0xff]
        %v605 = vld [vmem:[%s592 + $0x60] sm:$0xff]
        %v606 = vld [vmem:[%s592 + $0x68] sm:$0xff]
        %v607 = vld [vmem:[%s592 + $0x70] sm:$0xff]
        %v608 = vld [vmem:[%s592 + $0x78] sm:$0xff]
        %609 = vmatpush.msra.mxu0 %v608
        %610 = vmatpush.msra.mxu0 %v607
        %611 = vmatpush.msra.mxu0 %v606
        %612 = vmatpush.msra.mxu0 %v605
        %613 = vmatpush.msra.mxu0 %v604
        %614 = vmatpush.msra.mxu0 %v603
        %615 = vmatpush.msra.mxu0 %v602
        %616 = vmatpush.msra.mxu0 %v601
        %617 = vmatpush.msra.mxu0 %v600
        %618 = vmatpush.msra.mxu0 %v599
        %619 = vmatpush.msra.mxu0 %v598
        %620 = vmatpush.msra.mxu0 %v597
        %621 = vmatpush.msra.mxu0 %v596
        %622 = vmatpush.msra.mxu0 %v595
        %623 = vmatpush.msra.mxu0 %v594
        %624 = vmatpush.msra.mxu0 %v593
        %625 = vmatmul.f32.gmra.mxu0 %v591
        %v626 = vpop.f32.mrf.mxu0
        %v627 = vadd.f32 0.0, %v626
        %628 = vdwg.mxu0
        %629 = vmatpush.msra.mxu0 %v590
        %630 = vmatpush.msra.mxu0 %v589
        %631 = vmatpush.msra.mxu0 %v588
        %632 = vmatpush.msra.mxu0 %v587
        %633 = vmatpush.msra.mxu0 %v586
        %634 = vmatpush.msra.mxu0 %v585
        %635 = vmatpush.msra.mxu0 %v584
        %636 = vmatpush.msra.mxu0 %v583
        %637 = vmatpush.msra.mxu0 %v582
        %638 = vmatpush.msra.mxu0 %v581
        %639 = vmatpush.msra.mxu0 %v580
        %640 = vmatpush.msra.mxu0 %v579
        %641 = vmatpush.msra.mxu0 %v578
        %642 = vmatpush.msra.mxu0 %v577
        %643 = vmatpush.msra.mxu0 %v576
        %644 = vmatpush.msra.mxu0 %v575
        %645 = vmatmul.f32.gmra.mxu0 %v574
        %v646 = vpop.f32.mrf.mxu0
        %v647 = vadd.f32 %v627, %v646
        %648 = vdwg.mxu0
        %v649 = vld [vmem:[#allocation3 + $0x8] sm:$0xff]
        %s650 = scalar_lea.vmem [#allocation10], 256
        %v651 = vld [vmem:[%s650] sm:$0xff]
        %v652 = vld [vmem:[%s650 + $0x8] sm:$0xff]
        %v653 = vld [vmem:[%s650 + $0x10] sm:$0xff]
        %v654 = vld [vmem:[%s650 + $0x18] sm:$0xff]
        %v655 = vld [vmem:[%s650 + $0x20] sm:$0xff]
        %v656 = vld [vmem:[%s650 + $0x28] sm:$0xff]
        %v657 = vld [vmem:[%s650 + $0x30] sm:$0xff]
        %v658 = vld [vmem:[%s650 + $0x38] sm:$0xff]
        %v659 = vld [vmem:[%s650 + $0x40] sm:$0xff]
        %v660 = vld [vmem:[%s650 + $0x48] sm:$0xff]
        %v661 = vld [vmem:[%s650 + $0x50] sm:$0xff]
        %v662 = vld [vmem:[%s650 + $0x58] sm:$0xff]
        %v663 = vld [vmem:[%s650 + $0x60] sm:$0xff]
        %v664 = vld [vmem:[%s650 + $0x68] sm:$0xff]
        %v665 = vld [vmem:[%s650 + $0x70] sm:$0xff]
        %v666 = vld [vmem:[%s650 + $0x78] sm:$0xff]
        %667 = vmatpush.msra.mxu0 %v666
        %668 = vmatpush.msra.mxu0 %v665
        %669 = vmatpush.msra.mxu0 %v664
        %670 = vmatpush.msra.mxu0 %v663
        %671 = vmatpush.msra.mxu0 %v662
        %672 = vmatpush.msra.mxu0 %v661
        %673 = vmatpush.msra.mxu0 %v660
        %674 = vmatpush.msra.mxu0 %v659
        %675 = vmatpush.msra.mxu0 %v658
        %676 = vmatpush.msra.mxu0 %v657
        %677 = vmatpush.msra.mxu0 %v656
        %678 = vmatpush.msra.mxu0 %v655
        %679 = vmatpush.msra.mxu0 %v654
        %680 = vmatpush.msra.mxu0 %v653
        %681 = vmatpush.msra.mxu0 %v652
        %682 = vmatpush.msra.mxu0 %v651
        %683 = vmatmul.f32.gmra.mxu0 %v649
        %v684 = vpop.f32.mrf.mxu0
        %v685 = vadd.f32 0.0, %v684
        %686 = vdwg.mxu0
        %v687 = vadd.f32 %v647, %v685
        %v688 = vld [vmem:[%s4] sm:$0x1]
        %v690 = vperm.slane %v688, 0
        %v692 = vadd.f32 %v687, %v690
        %v693 = vmax.f32 %v692, 0.0
        %694 = vst [vmem:[#allocation4 + $0x8] sm:$0xff] %v693
        %v695 = vld [vmem:[#allocation4 + $0x4] sm:$0xff]
        %v696 = vld [vmem:[#allocation11] sm:$0xff]
        %v697 = vld [vmem:[#allocation11 + $0x8] sm:$0xff]
        %v698 = vld [vmem:[#allocation11 + $0x10] sm:$0xff]
        %v699 = vld [vmem:[#allocation11 + $0x18] sm:$0xff]
        %v700 = vld [vmem:[#allocation11 + $0x20] sm:$0xff]
        %v701 = vld [vmem:[#allocation11 + $0x28] sm:$0xff]
        %v702 = vld [vmem:[#allocation11 + $0x30] sm:$0xff]
        %v703 = vld [vmem:[#allocation11 + $0x38] sm:$0xff]
        %v704 = vld [vmem:[#allocation11 + $0x40] sm:$0xff]
        %v705 = vld [vmem:[#allocation11 + $0x48] sm:$0xff]
        %v706 = vld [vmem:[#allocation11 + $0x50] sm:$0xff]
        %v707 = vld [vmem:[#allocation11 + $0x58] sm:$0xff]
        %v708 = vld [vmem:[#allocation11 + $0x60] sm:$0xff]
        %v709 = vld [vmem:[#allocation11 + $0x68] sm:$0xff]
        %v710 = vld [vmem:[#allocation11 + $0x70] sm:$0xff]
        %v711 = vld [vmem:[#allocation11 + $0x78] sm:$0xff]
        %v712 = vld [vmem:[#allocation4 + $0x6] sm:$0xff]
        %s713 = scalar_lea.vmem [#allocation11], 128
        %v714 = vld [vmem:[%s713] sm:$0xff]
        %v715 = vld [vmem:[%s713 + $0x8] sm:$0xff]
        %v716 = vld [vmem:[%s713 + $0x10] sm:$0xff]
        %v717 = vld [vmem:[%s713 + $0x18] sm:$0xff]
        %v718 = vld [vmem:[%s713 + $0x20] sm:$0xff]
        %v719 = vld [vmem:[%s713 + $0x28] sm:$0xff]
        %v720 = vld [vmem:[%s713 + $0x30] sm:$0xff]
        %v721 = vld [vmem:[%s713 + $0x38] sm:$0xff]
        %v722 = vld [vmem:[%s713 + $0x40] sm:$0xff]
        %v723 = vld [vmem:[%s713 + $0x48] sm:$0xff]
        %v724 = vld [vmem:[%s713 + $0x50] sm:$0xff]
        %v725 = vld [vmem:[%s713 + $0x58] sm:$0xff]
        %v726 = vld [vmem:[%s713 + $0x60] sm:$0xff]
        %v727 = vld [vmem:[%s713 + $0x68] sm:$0xff]
        %v728 = vld [vmem:[%s713 + $0x70] sm:$0xff]
        %v729 = vld [vmem:[%s713 + $0x78] sm:$0xff]
        %730 = vmatpush.msra.mxu0 %v729
        %731 = vmatpush.msra.mxu0 %v728
        %732 = vmatpush.msra.mxu0 %v727
        %733 = vmatpush.msra.mxu0 %v726
        %734 = vmatpush.msra.mxu0 %v725
        %735 = vmatpush.msra.mxu0 %v724
        %736 = vmatpush.msra.mxu0 %v723
        %737 = vmatpush.msra.mxu0 %v722
        %738 = vmatpush.msra.mxu0 %v721
        %739 = vmatpush.msra.mxu0 %v720
        %740 = vmatpush.msra.mxu0 %v719
        %741 = vmatpush.msra.mxu0 %v718
        %742 = vmatpush.msra.mxu0 %v717
        %743 = vmatpush.msra.mxu0 %v716
        %744 = vmatpush.msra.mxu0 %v715
        %745 = vmatpush.msra.mxu0 %v714
        %746 = vmatmul.f32.gmra.mxu0 %v712
        %v747 = vpop.f32.mrf.mxu0
        %v748 = vadd.f32 0.0, %v747
        %749 = vdwg.mxu0
        %750 = vmatpush.msra.mxu0 %v711
        %751 = vmatpush.msra.mxu0 %v710
        %752 = vmatpush.msra.mxu0 %v709
        %753 = vmatpush.msra.mxu0 %v708
        %754 = vmatpush.msra.mxu0 %v707
        %755 = vmatpush.msra.mxu0 %v706
        %756 = vmatpush.msra.mxu0 %v705
        %757 = vmatpush.msra.mxu0 %v704
        %758 = vmatpush.msra.mxu0 %v703
        %759 = vmatpush.msra.mxu0 %v702
        %760 = vmatpush.msra.mxu0 %v701
        %761 = vmatpush.msra.mxu0 %v700
        %762 = vmatpush.msra.mxu0 %v699
        %763 = vmatpush.msra.mxu0 %v698
        %764 = vmatpush.msra.mxu0 %v697
        %765 = vmatpush.msra.mxu0 %v696
        %766 = vmatmul.f32.gmra.mxu0 %v695
        %v767 = vpop.f32.mrf.mxu0
        %v768 = vadd.f32 %v748, %v767
        %769 = vdwg.mxu0
        %v770 = vld [vmem:[#allocation4 + $0x8] sm:$0xff]
        %s771 = scalar_lea.vmem [#allocation11], 256
        %v772 = vld [vmem:[%s771] sm:$0xff]
        %v773 = vld [vmem:[%s771 + $0x8] sm:$0xff]
        %v774 = vld [vmem:[%s771 + $0x10] sm:$0xff]
        %v775 = vld [vmem:[%s771 + $0x18] sm:$0xff]
        %v776 = vld [vmem:[%s771 + $0x20] sm:$0xff]
        %v777 = vld [vmem:[%s771 + $0x28] sm:$0xff]
        %v778 = vld [vmem:[%s771 + $0x30] sm:$0xff]
        %v779 = vld [vmem:[%s771 + $0x38] sm:$0xff]
        %v780 = vld [vmem:[%s771 + $0x40] sm:$0xff]
        %v781 = vld [vmem:[%s771 + $0x48] sm:$0xff]
        %v782 = vld [vmem:[%s771 + $0x50] sm:$0xff]
        %v783 = vld [vmem:[%s771 + $0x58] sm:$0xff]
        %v784 = vld [vmem:[%s771 + $0x60] sm:$0xff]
        %v785 = vld [vmem:[%s771 + $0x68] sm:$0xff]
        %v786 = vld [vmem:[%s771 + $0x70] sm:$0xff]
        %v787 = vld [vmem:[%s771 + $0x78] sm:$0xff]
        %788 = vmatpush.msra.mxu0 %v787
        %789 = vmatpush.msra.mxu0 %v786
        %790 = vmatpush.msra.mxu0 %v785
        %791 = vmatpush.msra.mxu0 %v784
        %792 = vmatpush.msra.mxu0 %v783
        %793 = vmatpush.msra.mxu0 %v782
        %794 = vmatpush.msra.mxu0 %v781
        %795 = vmatpush.msra.mxu0 %v780
        %796 = vmatpush.msra.mxu0 %v779
        %797 = vmatpush.msra.mxu0 %v778
        %798 = vmatpush.msra.mxu0 %v777
        %799 = vmatpush.msra.mxu0 %v776
        %800 = vmatpush.msra.mxu0 %v775
        %801 = vmatpush.msra.mxu0 %v774
        %802 = vmatpush.msra.mxu0 %v773
        %803 = vmatpush.msra.mxu0 %v772
        %804 = vmatmul.f32.gmra.mxu0 %v770
        %v805 = vpop.f32.mrf.mxu0
        %v806 = vadd.f32 0.0, %v805
        %807 = vdwg.mxu0
        %v808 = vadd.f32 %v768, %v806
        %v809 = vld [vmem:[%s6] sm:$0x1]
        %v811 = vperm.slane %v809, 0
        %v813 = vadd.f32 %v808, %v811
        %v814 = vmax.f32 %v813, 0.0
        %v815 = vld [vmem:[%s378] sm:$0xff]
        %v816 = vld [vmem:[#allocation13] sm:$0xff]
        %v817 = vld [vmem:[#allocation13 + $0x8] sm:$0xff]
        %v818 = vld [vmem:[#allocation13 + $0x10] sm:$0xff]
        %v819 = vld [vmem:[#allocation13 + $0x18] sm:$0xff]
        %v820 = vld [vmem:[#allocation13 + $0x20] sm:$0xff]
        %v821 = vld [vmem:[#allocation13 + $0x28] sm:$0xff]
        %v822 = vld [vmem:[#allocation13 + $0x30] sm:$0xff]
        %v823 = vld [vmem:[#allocation13 + $0x38] sm:$0xff]
        %v824 = vld [vmem:[#allocation13 + $0x40] sm:$0xff]
        %v825 = vld [vmem:[#allocation13 + $0x48] sm:$0xff]
        %v826 = vld [vmem:[#allocation13 + $0x50] sm:$0xff]
        %v827 = vld [vmem:[#allocation13 + $0x58] sm:$0xff]
        %v828 = vld [vmem:[#allocation13 + $0x60] sm:$0xff]
        %v829 = vld [vmem:[#allocation13 + $0x68] sm:$0xff]
        %v830 = vld [vmem:[#allocation13 + $0x70] sm:$0xff]
        %v831 = vld [vmem:[#allocation13 + $0x78] sm:$0xff]
        %v832 = vld [vmem:[%s8] sm:$0x1]
        %v834 = vperm.slane %v832, 0
        %836 = vmatpush.msra.mxu0 %v831
        %837 = vmatpush.msra.mxu0 %v830
        %838 = vmatpush.msra.mxu0 %v829
        %839 = vmatpush.msra.mxu0 %v828
        %840 = vmatpush.msra.mxu0 %v827
        %841 = vmatpush.msra.mxu0 %v826
        %842 = vmatpush.msra.mxu0 %v825
        %843 = vmatpush.msra.mxu0 %v824
        %844 = vmatpush.msra.mxu0 %v823
        %845 = vmatpush.msra.mxu0 %v822
        %846 = vmatpush.msra.mxu0 %v821
        %847 = vmatpush.msra.mxu0 %v820
        %848 = vmatpush.msra.mxu0 %v819
        %849 = vmatpush.msra.mxu0 %v818
        %850 = vmatpush.msra.mxu0 %v817
        %851 = vmatpush.msra.mxu0 %v816
        %852 = vmatmul.f32.gmra.mxu0 %v815
        %v853 = vpop.f32.mrf.mxu0
        %v854 = vadd.f32 %v834, %v853
        %855 = vdwg.mxu0
        %v856 = vadd.f32 %v814, %v854
        %v857 = vmax.f32 %v856, 0.0
        %858 = vst [vmem:[%s433] sm:$0xff] %v857
        %s859 = sand.u32 %s246, 1
        %s860 = scalar_lea.sflag [#allocation7], %s859
        %s861 = sand.u32 %s246, 1
        %s862 = smul.addr %s861, 8
        %s863 = scalar_lea.vmem [#allocation14], %s862
        // Predicated region
        $region85: #{tpu_custom_call.1} parent=55 // pred_check
          %p864 = pneg %p256
        $region86: #{tpu_custom_call.1} parent=55 // pred_check_branch
          %866 = sbr.rel (%p864) target = $region88
        $region87: #{tpu_custom_call.1} parent=55 // pred_region
          %868 = vsyncadd %s860, 0
          %s869 = smul.addr %s32, 2
          %s870 = sadd.s32 %s33, %s869
          %s871 = smul.addr %s870, 8
          %s872 = scalar_lea.hbm %s9, %s871
          %s874 = sshll.u32 %s863, 4
          %s875 = int_to_ptr.vmem [resolvable:$true] %s874
          %s876 = sshll.u32 %s872, 4
          %s877 = int_to_ptr.hbm [resolvable:$true] %s876
          %879 = dma.vmem_to_hbm [thread:$0]  %s875, 128, %s877, %s860
        $region88: #{tpu_custom_call.1} parent=55 // pred_fallthru
          _
      $region56: #{tpu_custom_call.1} parent=5 // pred_fallthru
        _
      %p880 = scmp.le.s32.totalorder 2, %s23
      // Predicated region
      $region89: #{tpu_custom_call.1} parent=5 // pred_check
        %p881 = pneg %p880
      $region90: #{tpu_custom_call.1} parent=5 // pred_check_branch
        %883 = sbr.rel (%p881) target = $region92
      $region91: #{tpu_custom_call.1} parent=5 // pred_region
        %s884 = ssub.s32 %s23, 2
        // Predicated region
        $region93: #{tpu_custom_call.1} parent=91 // pred_check
          %p885 = pneg %p262
        $region94: #{tpu_custom_call.1} parent=91 // pred_check_branch
          %887 = sbr.rel (%p885) target = $region96
        $region95: #{tpu_custom_call.1} parent=91 // pred_region
          %s888 = sand.u32 %s247, 1
          %s889 = scalar_lea.sflag [#allocation7], %s888
          %s890 = sand.u32 %s247, 1
          %s891 = smul.addr %s890, 8
          %s892 = scalar_lea.vmem [#allocation14], %s891
          %894 = dma.done %s889, 128
        $region96: #{tpu_custom_call.1} parent=91 // pred_fallthru
          _
      $region92: #{tpu_custom_call.1} parent=5 // pred_fallthru
        _
    $region6: #{tpu_custom_call.1} parent=1 // loop_footer
      %s27 = sadd.s32 1, %s23
    $region7: #{tpu_custom_call.1} parent=1 // loop_footer_branch
      %22 = sbr.rel target = $region3
    $region8: #{tpu_custom_call.1} parent=1 // loop_exit
      _
    %895 = vsyncpa [#allocation6], 1
    %s896 = scalar_lea.sflag [#allocation6], 1
    %897 = vsyncpa %s896, 1
    %898 = vsyncpa [#allocation9], 1
    %899 = vsyncpa [#allocation12], 1
    %900 = vsyncpa [#allocation7], 1
    %s901 = scalar_lea.sflag [#allocation7], 1
    %902 = vsyncpa %s901, 1

</llo_original>
